<compile_context>
chip_gen: v6e
topology: v6e:2x2x1
jax: 0.10.0
libtpu: 0.0.40
codegen_flags: <defaults>
</compile_context>

<pallas_src>
import functools

import jax
import jax.numpy as jnp
from jax import lax
from jax.experimental import pallas as pl
from jax.experimental.pallas import tpu as pltpu


def _decoder_kernel(latent_ref, wlh_ref, blh_ref,
                    wih0_ref, whh0_ref, b0_ref,
                    wcat_ref, brest_ref,
                    who_ref, bho_ref, wdfc_ref, bdfc_ref,
                    latent_out_ref, out_ref, dfc_ref,
                    hid_scr,
                    *, depth, hidden, seq_len):
    B = latent_ref.shape[0]
    H = hidden

    # --- latent_to_hidden (once per call) ---
    latent_h = (jnp.dot(latent_ref[...], wlh_ref[...],
                        preferred_element_type=jnp.float32) + blh_ref[...])
    latent_out_ref[...] = latent_h.astype(latent_out_ref.dtype)

    # --- hoisted layer-0 input contribution: the LSTM input is the same latent
    #     vector at every timestep, so x_t @ W_ih0 + b0 is time-invariant. ---
    ih0 = (jnp.dot(latent_h, wih0_ref[...],
                   preferred_element_type=jnp.float32) + b0_ref[...])       # (B, 4H)

    # Hoist weight loads out of the time loop.
    w_hh0 = whh0_ref[...]                                                    # (H, 4H)
    w_cat = [wcat_ref[l] for l in range(depth - 1)]                          # (2H, 4H)
    b_rest = [brest_ref[l] for l in range(depth - 1)]                        # (1, 4H)

    def lstm_cell(gates, c_prev):
        # Whole-tile activations (EUP), slice gates after (PyTorch order i,f,g,o).
        sig = jax.nn.sigmoid(gates)
        th = jnp.tanh(gates)
        i_g = sig[:, 0 * H:1 * H]
        f_g = sig[:, 1 * H:2 * H]
        g_g = th[:, 2 * H:3 * H]
        o_g = sig[:, 3 * H:4 * H]
        c_new = f_g * c_prev + i_g * g_g
        h_new = o_g * jnp.tanh(c_new)
        return h_new, c_new

    def step(t, carry):
        hs, cs = carry
        # Layer 0: recurrent matmul only (input contribution precomputed above).
        gates0 = ih0 + jnp.dot(hs[0], w_hh0, preferred_element_type=jnp.float32)
        h_l, c_l = lstm_cell(gates0, cs[0])
        new_h, new_c = [h_l], [c_l]
        inp = h_l
        # Layers >= 1: single fused [inp, h_prev] @ [W_ih; W_hh] matmul per layer.
        for l in range(1, depth):
            xcat = jnp.concatenate([inp, hs[l]], axis=-1)                    # (B, 2H)
            gates = (jnp.dot(xcat, w_cat[l - 1],
                             preferred_element_type=jnp.float32) + b_rest[l - 1])
            h_l, c_l = lstm_cell(gates, cs[l])
            new_h.append(h_l)
            new_c.append(c_l)
            inp = h_l
        hid_scr[t] = inp                                                     # top-layer h_t
        return tuple(new_h), tuple(new_c)

    zeros = tuple(jnp.zeros((B, H), jnp.float32) for _ in range(depth))
    lax.fori_loop(0, seq_len, step, (zeros, zeros), unroll=True)

    # --- non-recurrent output projections, hoisted out of the recurrence and
    #     applied to the whole sequence as single slab matmuls + slab stores ---
    hid = hid_scr[...].reshape(seq_len * B, H)                               # (T*B, H)
    out2d = (jnp.dot(hid, who_ref[...],
                     preferred_element_type=jnp.float32) + bho_ref[...])     # (T*B, Hm)
    out_ref[...] = out2d.reshape(out_ref.shape).astype(out_ref.dtype)
    dfc2d = (jnp.dot(out2d, wdfc_ref[...],
                     preferred_element_type=jnp.float32) + bdfc_ref[...])    # (T*B, O)
    dfc_ref[...] = dfc2d.reshape(dfc_ref.shape).astype(dfc_ref.dtype)


def decoder_forward(latent, params, *, depth, hidden, seq_len):
    """latent: (B, L) float32. Returns (dfc_seq, out, latent_input) as the PyTorch module."""
    B, _ = latent.shape
    H = hidden
    T = seq_len
    Hm = params["w_ho"].shape[1]
    O = params["w_dfc"].shape[1]

    # Fuse [W_ih; W_hh] for layers >= 1 (one matmul per layer per timestep).
    if depth > 1:
        w_cat = jnp.concatenate([params["w_ihr"], params["w_hh"][1:]], axis=1)  # (depth-1, 2H, 4H)
        b_rest = params["b_lstm"][1:]                                            # (depth-1, 1, 4H)
    else:
        w_cat = jnp.zeros((1, 2 * H, 4 * H), jnp.float32)    # dummy, unused
        b_rest = jnp.zeros((1, 1, 4 * H), jnp.float32)

    kernel = functools.partial(_decoder_kernel, depth=depth, hidden=H, seq_len=T)

    latent_input, out_tbm, dfc_tbo = pl.pallas_call(
        kernel,
        out_shape=(
            jax.ShapeDtypeStruct((B, H), jnp.float32),        # latent_input
            jax.ShapeDtypeStruct((T, B, Hm), jnp.float32),    # hidden_to_output(decoder_output)
            jax.ShapeDtypeStruct((T, B, O), jnp.float32),     # dfc(...) per step
        ),
        scratch_shapes=[pltpu.VMEM((T, B, H), jnp.float32)],  # top-layer hidden slab
    )(latent, params["w_lh"], params["b_lh"],
      params["w_ih0"], params["w_hh"][0], params["b_lstm"][0],
      w_cat, b_rest,
      params["w_ho"], params["b_ho"], params["w_dfc"], params["b_dfc"])

    # Reproduce the PyTorch layout plumbing outside the kernel.
    out = jnp.transpose(out_tbm, (1, 2, 0))                   # (B, Hm, T)  == permute(0,2,1)
    dfc_bto = jnp.transpose(dfc_tbo, (1, 0, 2))               # (B, T, O)   (stack + transpose)
    dfc_seq = dfc_bto.reshape(B, -1, T)                       # replicate torch .reshape(B,-1,T)
    return dfc_seq, out, latent_input


def _reference(latent, params, *, depth, hidden, seq_len):
    """Pure-JAX reference mirroring the PyTorch module exactly."""
    B = latent.shape[0]
    H = hidden
    latent_input = latent @ params["w_lh"] + params["b_lh"]                  # (B, H)
    x_tbh = jnp.broadcast_to(latent_input[None], (seq_len, B, H))            # repeated input

    def step(carry, x_t):
        h, c = carry
        inp = x_t
        hs, cs = [], []
        for l in range(depth):
            w_ih = params["w_ih0"] if l == 0 else params["w_ihr"][l - 1]
            gates = inp @ w_ih + h[l] @ params["w_hh"][l] + params["b_lstm"][l]
            i_g = jax.nn.sigmoid(gates[:, 0 * H:1 * H])
            f_g = jax.nn.sigmoid(gates[:, 1 * H:2 * H])
            g_g = jnp.tanh(gates[:, 2 * H:3 * H])
            o_g = jax.nn.sigmoid(gates[:, 3 * H:4 * H])
            cn = f_g * c[l] + i_g * g_g
            hn = o_g * jnp.tanh(cn)
            hs.append(hn)
            cs.append(cn)
            inp = hn
        return (jnp.stack(hs), jnp.stack(cs)), inp

    init = (jnp.zeros((depth, B, H)), jnp.zeros((depth, B, H)))
    _, dec_tbh = lax.scan(step, init, x_tbh)                                 # (T, B, H)
    dec_bth = jnp.transpose(dec_tbh, (1, 0, 2))                              # (B, T, H)
    out_btm = dec_bth @ params["w_ho"] + params["b_ho"]                      # (B, T, Hm)
    out = jnp.transpose(out_btm, (0, 2, 1))                                  # (B, Hm, T)
    dfc_bto = out_btm @ params["w_dfc"] + params["b_dfc"]                    # (B, T, O)
    dfc_seq = dfc_bto.reshape(B, -1, seq_len)                                # torch reshape semantics
    return dfc_seq, out, latent_input


if __name__ == "__main__":
    # Module hyperparameters (small; batch chosen as a multiple of 8 per perf review).
    batch = 8
    seq_len = 8
    hidden_size = 32
    hidden_layer_depth = 2
    latent_length = 16
    mlp_hidden = 16
    output_size = 4

    H, Hm, O, L = hidden_size, mlp_hidden, output_size, latent_length

    key = jax.random.PRNGKey(0)
    ks = jax.random.split(key, 12)
    s = 0.1

    params = {
        # latent_to_hidden: Linear(L -> H), stored pre-transposed (L, H)
        "w_lh": s * jax.random.normal(ks[0], (L, H), jnp.float32),
        "b_lh": s * jax.random.normal(ks[1], (1, H), jnp.float32),
        # LSTM layer 0 input weights (input_size == H), layers 1.. stacked
        "w_ih0": s * jax.random.normal(ks[2], (H, 4 * H), jnp.float32),
        "w_ihr": s * jax.random.normal(
            ks[3], (max(hidden_layer_depth - 1, 1), H, 4 * H), jnp.float32),
        # recurrent weights and combined biases (b_ih + b_hh), stacked over layers
        "w_hh": s * jax.random.normal(
            ks[4], (hidden_layer_depth, H, 4 * H), jnp.float32),
        "b_lstm": s * jax.random.normal(
            ks[5], (hidden_layer_depth, 1, 4 * H), jnp.float32),
        # hidden_to_output: Linear(H -> Hm), pre-transposed
        "w_ho": s * jax.random.normal(ks[6], (H, Hm), jnp.float32),
        "b_ho": s * jax.random.normal(ks[7], (1, Hm), jnp.float32),
        # dfc: Linear(Hm -> output_size), pre-transposed (use_mlp=True path)
        "w_dfc": s * jax.random.normal(ks[8], (Hm, O), jnp.float32),
        "b_dfc": s * jax.random.normal(ks[9], (1, O), jnp.float32),
    }

    latent = jax.random.normal(ks[10], (batch, L), jnp.float32)

    dfc_seq, out, latent_input = decoder_forward(
        latent, params, depth=hidden_layer_depth, hidden=H, seq_len=seq_len)
    jax.block_until_ready((dfc_seq, out, latent_input))

    ref_dfc, ref_out, ref_li = _reference(
        latent, params, depth=hidden_layer_depth, hidden=H, seq_len=seq_len)

    assert dfc_seq.shape == (batch, output_size, seq_len)
    assert out.shape == (batch, mlp_hidden, seq_len)
    assert latent_input.shape == (batch, hidden_size)
    assert jnp.allclose(latent_input, ref_li, atol=1e-4)
    assert jnp.allclose(out, ref_out, atol=1e-4)
    assert jnp.allclose(dfc_seq, ref_dfc, atol=1e-4)

    print("KERNEL_OK")
</pallas_src>

<mosaic_0001>
module attributes {stable_mosaic.version = 11 : i64} {
  func.func @_decoder_kernel(%arg0: memref<8x16xf32, #tpu.memory_space<vmem>>, %arg1: memref<16x32xf32, #tpu.memory_space<vmem>>, %arg2: memref<1x32xf32, #tpu.memory_space<vmem>>, %arg3: memref<32x128xf32, #tpu.memory_space<vmem>>, %arg4: memref<32x128xf32, #tpu.memory_space<vmem>>, %arg5: memref<1x128xf32, #tpu.memory_space<vmem>>, %arg6: memref<1x64x128xf32, #tpu.memory_space<vmem>>, %arg7: memref<1x1x128xf32, #tpu.memory_space<vmem>>, %arg8: memref<32x16xf32, #tpu.memory_space<vmem>>, %arg9: memref<1x16xf32, #tpu.memory_space<vmem>>, %arg10: memref<16x4xf32, #tpu.memory_space<vmem>>, %arg11: memref<1x4xf32, #tpu.memory_space<vmem>>, %arg12: memref<8x32xf32, #tpu.memory_space<vmem>>, %arg13: memref<8x8x16xf32, #tpu.memory_space<vmem>>, %arg14: memref<8x8x4xf32, #tpu.memory_space<vmem>>, %arg15: memref<8x8x32xf32, #tpu.memory_space<vmem>>) attributes {dimension_semantics = [], scalar_prefetch = 0 : i64, scratch_operands = 1 : i64, tpu.core_type = #tpu.core_type<tc>} {
    %c0 = arith.constant 0 : index
    %c0_0 = arith.constant 0 : index
    %0 = vector.load %arg0[%c0, %c0_0] : memref<8x16xf32, #tpu.memory_space<vmem>>, vector<8x16xf32>
    %c0_1 = arith.constant 0 : index
    %c0_2 = arith.constant 0 : index
    %1 = vector.load %arg1[%c0_1, %c0_2] : memref<16x32xf32, #tpu.memory_space<vmem>>, vector<16x32xf32>
    %cst = arith.constant dense<0.000000e+00> : vector<8x32xf32>
    %2 = tpu.matmul %0, %1, %cst {dimension_numbers = #tpu.dot_dimension_numbers<[1], [0], [0], [1], [0, 0, 1, 1], [], []>} : vector<8x16xf32>, vector<16x32xf32>, vector<8x32xf32> -> vector<8x32xf32>
    %c0_3 = arith.constant 0 : index
    %c0_4 = arith.constant 0 : index
    %3 = vector.load %arg2[%c0_3, %c0_4] : memref<1x32xf32, #tpu.memory_space<vmem>>, vector<1x32xf32>
    %4 = vector.broadcast %3 : vector<1x32xf32> to vector<8x32xf32>
    %5 = arith.addf %2, %4 : vector<8x32xf32>
    %c0_5 = arith.constant 0 : index
    %c0_6 = arith.constant 0 : index
    %6 = vector.load %arg12[%c0_5, %c0_6] : memref<8x32xf32, #tpu.memory_space<vmem>>, vector<8x32xf32>
    tpu.vector_store %arg12[%c0_5, %c0_6], %5 {strides = array<i32>} : memref<8x32xf32, #tpu.memory_space<vmem>>, vector<8x32xf32>,
    %c0_7 = arith.constant 0 : index
    %c0_8 = arith.constant 0 : index
    %7 = vector.load %arg3[%c0_7, %c0_8] : memref<32x128xf32, #tpu.memory_space<vmem>>, vector<32x128xf32>
    %cst_9 = arith.constant dense<0.000000e+00> : vector<8x128xf32>
    %8 = tpu.matmul %5, %7, %cst_9 {dimension_numbers = #tpu.dot_dimension_numbers<[1], [0], [0], [1], [0, 0, 1, 1], [], []>} : vector<8x32xf32>, vector<32x128xf32>, vector<8x128xf32> -> vector<8x128xf32>
    %c0_10 = arith.constant 0 : index
    %c0_11 = arith.constant 0 : index
    %9 = vector.load %arg5[%c0_10, %c0_11] : memref<1x128xf32, #tpu.memory_space<vmem>>, vector<1x128xf32>
    %10 = vector.broadcast %9 : vector<1x128xf32> to vector<8x128xf32>
    %11 = arith.addf %8, %10 : vector<8x128xf32>
    %c0_12 = arith.constant 0 : index
    %c0_13 = arith.constant 0 : index
    %12 = vector.load %arg4[%c0_12, %c0_13] : memref<32x128xf32, #tpu.memory_space<vmem>>, vector<32x128xf32>
    %c0_14 = arith.constant 0 : index
    %c0_15 = arith.constant 0 : index
    %c0_16 = arith.constant 0 : index
    %13 = vector.load %arg6[%c0_14, %c0_15, %c0_16] : memref<1x64x128xf32, #tpu.memory_space<vmem>>, vector<1x64x128xf32>
    %14 = vector.shape_cast %13 : vector<1x64x128xf32> to vector<64x128xf32>
    %c0_17 = arith.constant 0 : index
    %c0_18 = arith.constant 0 : index
    %c0_19 = arith.constant 0 : index
    %15 = vector.load %arg7[%c0_17, %c0_18, %c0_19] : memref<1x1x128xf32, #tpu.memory_space<vmem>>, vector<1x1x128xf32>
    %16 = vector.shape_cast %15 : vector<1x1x128xf32> to vector<1x128xf32>
    %cst_20 = arith.constant 0.000000e+00 : f32
    %17 = vector.broadcast %cst_20 : f32 to vector<8x32xf32>
    %cst_21 = arith.constant 0.000000e+00 : f32
    %18 = vector.broadcast %cst_21 : f32 to vector<8x32xf32>
    %c0_i32 = arith.constant 0 : i32
    %cst_22 = arith.constant dense<0.000000e+00> : vector<8x128xf32>
    %19 = tpu.matmul %17, %12, %cst_22 {dimension_numbers = #tpu.dot_dimension_numbers<[1], [0], [0], [1], [0, 0, 1, 1], [], []>} : vector<8x32xf32>, vector<32x128xf32>, vector<8x128xf32> -> vector<8x128xf32>
    %20 = arith.addf %11, %19 : vector<8x128xf32>
    %21 = arith.negf %20 : vector<8x128xf32>
    %22 = math.exp %21 : vector<8x128xf32>
    %cst_23 = arith.constant 1.000000e+00 : f32
    %23 = vector.broadcast %cst_23 : f32 to vector<8x128xf32>
    %24 = arith.addf %23, %22 : vector<8x128xf32>
    %25 = arith.divf %23, %24 : vector<8x128xf32>
    %26 = math.tanh %20 : vector<8x128xf32>
    %27 = vector.extract_strided_slice %25 {offsets = [0, 0], sizes = [8, 32], strides = [1, 1]} : vector<8x128xf32> to vector<8x32xf32>
    %28 = vector.extract_strided_slice %25 {offsets = [0, 32], sizes = [8, 32], strides = [1, 1]} : vector<8x128xf32> to vector<8x32xf32>
    %29 = vector.extract_strided_slice %26 {offsets = [0, 64], sizes = [8, 32], strides = [1, 1]} : vector<8x128xf32> to vector<8x32xf32>
    %30 = vector.extract_strided_slice %25 {offsets = [0, 96], sizes = [8, 32], strides = [1, 1]} : vector<8x128xf32> to vector<8x32xf32>
    %31 = arith.mulf %28, %17 : vector<8x32xf32>
    %32 = arith.mulf %27, %29 : vector<8x32xf32>
    %33 = arith.addf %31, %32 : vector<8x32xf32>
    %34 = math.tanh %33 : vector<8x32xf32>
    %35 = arith.mulf %30, %34 : vector<8x32xf32>
    %36 = tpu.concatenate %35, %18 in 1 : vector<8x32xf32>, vector<8x32xf32> -> vector<8x64xf32>
    %cst_24 = arith.constant dense<0.000000e+00> : vector<8x128xf32>
    %37 = tpu.matmul %36, %14, %cst_24 {dimension_numbers = #tpu.dot_dimension_numbers<[1], [0], [0], [1], [0, 0, 1, 1], [], []>} : vector<8x64xf32>, vector<64x128xf32>, vector<8x128xf32> -> vector<8x128xf32>
    %38 = vector.broadcast %16 : vector<1x128xf32> to vector<8x128xf32>
    %39 = arith.addf %37, %38 : vector<8x128xf32>
    %40 = arith.negf %39 : vector<8x128xf32>
    %41 = math.exp %40 : vector<8x128xf32>
    %cst_25 = arith.constant 1.000000e+00 : f32
    %42 = vector.broadcast %cst_25 : f32 to vector<8x128xf32>
    %43 = arith.addf %42, %41 : vector<8x128xf32>
    %44 = arith.divf %42, %43 : vector<8x128xf32>
    %45 = math.tanh %39 : vector<8x128xf32>
    %46 = vector.extract_strided_slice %44 {offsets = [0, 0], sizes = [8, 32], strides = [1, 1]} : vector<8x128xf32> to vector<8x32xf32>
    %47 = vector.extract_strided_slice %44 {offsets = [0, 32], sizes = [8, 32], strides = [1, 1]} : vector<8x128xf32> to vector<8x32xf32>
    %48 = vector.extract_strided_slice %45 {offsets = [0, 64], sizes = [8, 32], strides = [1, 1]} : vector<8x128xf32> to vector<8x32xf32>
    %49 = vector.extract_strided_slice %44 {offsets = [0, 96], sizes = [8, 32], strides = [1, 1]} : vector<8x128xf32> to vector<8x32xf32>
    %50 = arith.mulf %47, %18 : vector<8x32xf32>
    %51 = arith.mulf %46, %48 : vector<8x32xf32>
    %52 = arith.addf %50, %51 : vector<8x32xf32>
    %53 = math.tanh %52 : vector<8x32xf32>
    %54 = arith.mulf %49, %53 : vector<8x32xf32>
    %55 = arith.index_cast %c0_i32 : i32 to index
    %c0_26 = arith.constant 0 : index
    %c0_27 = arith.constant 0 : index
    %56 = vector.load %arg15[%55, %c0_26, %c0_27] : memref<8x8x32xf32, #tpu.memory_space<vmem>>, vector<1x8x32xf32>
    %57 = vector.shape_cast %56 : vector<1x8x32xf32> to vector<8x32xf32>
    %58 = vector.shape_cast %54 : vector<8x32xf32> to vector<1x8x32xf32>
    tpu.vector_store %arg15[%55, %c0_26, %c0_27], %58 {strides = array<i32>} : memref<8x8x32xf32, #tpu.memory_space<vmem>>, vector<1x8x32xf32>,
    %c1_i32 = arith.constant 1 : i32
    %cst_28 = arith.constant dense<0.000000e+00> : vector<8x128xf32>
    %59 = tpu.matmul %35, %12, %cst_28 {dimension_numbers = #tpu.dot_dimension_numbers<[1], [0], [0], [1], [0, 0, 1, 1], [], []>} : vector<8x32xf32>, vector<32x128xf32>, vector<8x128xf32> -> vector<8x128xf32>
    %60 = arith.addf %11, %59 : vector<8x128xf32>
    %61 = arith.negf %60 : vector<8x128xf32>
    %62 = math.exp %61 : vector<8x128xf32>
    %cst_29 = arith.constant 1.000000e+00 : f32
    %63 = vector.broadcast %cst_29 : f32 to vector<8x128xf32>
    %64 = arith.addf %63, %62 : vector<8x128xf32>
    %65 = arith.divf %63, %64 : vector<8x128xf32>
    %66 = math.tanh %60 : vector<8x128xf32>
    %67 = vector.extract_strided_slice %65 {offsets = [0, 0], sizes = [8, 32], strides = [1, 1]} : vector<8x128xf32> to vector<8x32xf32>
    %68 = vector.extract_strided_slice %65 {offsets = [0, 32], sizes = [8, 32], strides = [1, 1]} : vector<8x128xf32> to vector<8x32xf32>
    %69 = vector.extract_strided_slice %66 {offsets = [0, 64], sizes = [8, 32], strides = [1, 1]} : vector<8x128xf32> to vector<8x32xf32>
    %70 = vector.extract_strided_slice %65 {offsets = [0, 96], sizes = [8, 32], strides = [1, 1]} : vector<8x128xf32> to vector<8x32xf32>
    %71 = arith.mulf %68, %33 : vector<8x32xf32>
    %72 = arith.mulf %67, %69 : vector<8x32xf32>
    %73 = arith.addf %71, %72 : vector<8x32xf32>
    %74 = math.tanh %73 : vector<8x32xf32>
    %75 = arith.mulf %70, %74 : vector<8x32xf32>
    %76 = tpu.concatenate %75, %54 in 1 : vector<8x32xf32>, vector<8x32xf32> -> vector<8x64xf32>
    %cst_30 = arith.constant dense<0.000000e+00> : vector<8x128xf32>
    %77 = tpu.matmul %76, %14, %cst_30 {dimension_numbers = #tpu.dot_dimension_numbers<[1], [0], [0], [1], [0, 0, 1, 1], [], []>} : vector<8x64xf32>, vector<64x128xf32>, vector<8x128xf32> -> vector<8x128xf32>
    %78 = vector.broadcast %16 : vector<1x128xf32> to vector<8x128xf32>
    %79 = arith.addf %77, %78 : vector<8x128xf32>
    %80 = arith.negf %79 : vector<8x128xf32>
    %81 = math.exp %80 : vector<8x128xf32>
    %cst_31 = arith.constant 1.000000e+00 : f32
    %82 = vector.broadcast %cst_31 : f32 to vector<8x128xf32>
    %83 = arith.addf %82, %81 : vector<8x128xf32>
    %84 = arith.divf %82, %83 : vector<8x128xf32>
    %85 = math.tanh %79 : vector<8x128xf32>
    %86 = vector.extract_strided_slice %84 {offsets = [0, 0], sizes = [8, 32], strides = [1, 1]} : vector<8x128xf32> to vector<8x32xf32>
    %87 = vector.extract_strided_slice %84 {offsets = [0, 32], sizes = [8, 32], strides = [1, 1]} : vector<8x128xf32> to vector<8x32xf32>
    %88 = vector.extract_strided_slice %85 {offsets = [0, 64], sizes = [8, 32], strides = [1, 1]} : vector<8x128xf32> to vector<8x32xf32>
    %89 = vector.extract_strided_slice %84 {offsets = [0, 96], sizes = [8, 32], strides = [1, 1]} : vector<8x128xf32> to vector<8x32xf32>
    %90 = arith.mulf %87, %52 : vector<8x32xf32>
    %91 = arith.mulf %86, %88 : vector<8x32xf32>
    %92 = arith.addf %90, %91 : vector<8x32xf32>
    %93 = math.tanh %92 : vector<8x32xf32>
    %94 = arith.mulf %89, %93 : vector<8x32xf32>
    %95 = arith.index_cast %c1_i32 : i32 to index
    %c0_32 = arith.constant 0 : index
    %c0_33 = arith.constant 0 : index
    %96 = vector.load %arg15[%95, %c0_32, %c0_33] : memref<8x8x32xf32, #tpu.memory_space<vmem>>, vector<1x8x32xf32>
    %97 = vector.shape_cast %96 : vector<1x8x32xf32> to vector<8x32xf32>
    %98 = vector.shape_cast %94 : vector<8x32xf32> to vector<1x8x32xf32>
    tpu.vector_store %arg15[%95, %c0_32, %c0_33], %98 {strides = array<i32>} : memref<8x8x32xf32, #tpu.memory_space<vmem>>, vector<1x8x32xf32>,
    %c2_i32 = arith.constant 2 : i32
    %cst_34 = arith.constant dense<0.000000e+00> : vector<8x128xf32>
    %99 = tpu.matmul %75, %12, %cst_34 {dimension_numbers = #tpu.dot_dimension_numbers<[1], [0], [0], [1], [0, 0, 1, 1], [], []>} : vector<8x32xf32>, vector<32x128xf32>, vector<8x128xf32> -> vector<8x128xf32>
    %100 = arith.addf %11, %99 : vector<8x128xf32>
    %101 = arith.negf %100 : vector<8x128xf32>
    %102 = math.exp %101 : vector<8x128xf32>
    %cst_35 = arith.constant 1.000000e+00 : f32
    %103 = vector.broadcast %cst_35 : f32 to vector<8x128xf32>
    %104 = arith.addf %103, %102 : vector<8x128xf32>
    %105 = arith.divf %103, %104 : vector<8x128xf32>
    %106 = math.tanh %100 : vector<8x128xf32>
    %107 = vector.extract_strided_slice %105 {offsets = [0, 0], sizes = [8, 32], strides = [1, 1]} : vector<8x128xf32> to vector<8x32xf32>
    %108 = vector.extract_strided_slice %105 {offsets = [0, 32], sizes = [8, 32], strides = [1, 1]} : vector<8x128xf32> to vector<8x32xf32>
    %109 = vector.extract_strided_slice %106 {offsets = [0, 64], sizes = [8, 32], strides = [1, 1]} : vector<8x128xf32> to vector<8x32xf32>
    %110 = vector.extract_strided_slice %105 {offsets = [0, 96], sizes = [8, 32], strides = [1, 1]} : vector<8x128xf32> to vector<8x32xf32>
    %111 = arith.mulf %108, %73 : vector<8x32xf32>
    %112 = arith.mulf %107, %109 : vector<8x32xf32>
    %113 = arith.addf %111, %112 : vector<8x32xf32>
    %114 = math.tanh %113 : vector<8x32xf32>
    %115 = arith.mulf %110, %114 : vector<8x32xf32>
    %116 = tpu.concatenate %115, %94 in 1 : vector<8x32xf32>, vector<8x32xf32> -> vector<8x64xf32>
    %cst_36 = arith.constant dense<0.000000e+00> : vector<8x128xf32>
    %117 = tpu.matmul %116, %14, %cst_36 {dimension_numbers = #tpu.dot_dimension_numbers<[1], [0], [0], [1], [0, 0, 1, 1], [], []>} : vector<8x64xf32>, vector<64x128xf32>, vector<8x128xf32> -> vector<8x128xf32>
    %118 = vector.broadcast %16 : vector<1x128xf32> to vector<8x128xf32>
    %119 = arith.addf %117, %118 : vector<8x128xf32>
    %120 = arith.negf %119 : vector<8x128xf32>
    %121 = math.exp %120 : vector<8x128xf32>
    %cst_37 = arith.constant 1.000000e+00 : f32
    %122 = vector.broadcast %cst_37 : f32 to vector<8x128xf32>
    %123 = arith.addf %122, %121 : vector<8x128xf32>
    %124 = arith.divf %122, %123 : vector<8x128xf32>
    %125 = math.tanh %119 : vector<8x128xf32>
    %126 = vector.extract_strided_slice %124 {offsets = [0, 0], sizes = [8, 32], strides = [1, 1]} : vector<8x128xf32> to vector<8x32xf32>
    %127 = vector.extract_strided_slice %124 {offsets = [0, 32], sizes = [8, 32], strides = [1, 1]} : vector<8x128xf32> to vector<8x32xf32>
    %128 = vector.extract_strided_slice %125 {offsets = [0, 64], sizes = [8, 32], strides = [1, 1]} : vector<8x128xf32> to vector<8x32xf32>
    %129 = vector.extract_strided_slice %124 {offsets = [0, 96], sizes = [8, 32], strides = [1, 1]} : vector<8x128xf32> to vector<8x32xf32>
    %130 = arith.mulf %127, %92 : vector<8x32xf32>
    %131 = arith.mulf %126, %128 : vector<8x32xf32>
    %132 = arith.addf %130, %131 : vector<8x32xf32>
    %133 = math.tanh %132 : vector<8x32xf32>
    %134 = arith.mulf %129, %133 : vector<8x32xf32>
    %135 = arith.index_cast %c2_i32 : i32 to index
    %c0_38 = arith.constant 0 : index
    %c0_39 = arith.constant 0 : index
    %136 = vector.load %arg15[%135, %c0_38, %c0_39] : memref<8x8x32xf32, #tpu.memory_space<vmem>>, vector<1x8x32xf32>
    %137 = vector.shape_cast %136 : vector<1x8x32xf32> to vector<8x32xf32>
    %138 = vector.shape_cast %134 : vector<8x32xf32> to vector<1x8x32xf32>
    tpu.vector_store %arg15[%135, %c0_38, %c0_39], %138 {strides = array<i32>} : memref<8x8x32xf32, #tpu.memory_space<vmem>>, vector<1x8x32xf32>,
    %c3_i32 = arith.constant 3 : i32
    %cst_40 = arith.constant dense<0.000000e+00> : vector<8x128xf32>
    %139 = tpu.matmul %115, %12, %cst_40 {dimension_numbers = #tpu.dot_dimension_numbers<[1], [0], [0], [1], [0, 0, 1, 1], [], []>} : vector<8x32xf32>, vector<32x128xf32>, vector<8x128xf32> -> vector<8x128xf32>
    %140 = arith.addf %11, %139 : vector<8x128xf32>
    %141 = arith.negf %140 : vector<8x128xf32>
    %142 = math.exp %141 : vector<8x128xf32>
    %cst_41 = arith.constant 1.000000e+00 : f32
    %143 = vector.broadcast %cst_41 : f32 to vector<8x128xf32>
    %144 = arith.addf %143, %142 : vector<8x128xf32>
    %145 = arith.divf %143, %144 : vector<8x128xf32>
    %146 = math.tanh %140 : vector<8x128xf32>
    %147 = vector.extract_strided_slice %145 {offsets = [0, 0], sizes = [8, 32], strides = [1, 1]} : vector<8x128xf32> to vector<8x32xf32>
    %148 = vector.extract_strided_slice %145 {offsets = [0, 32], sizes = [8, 32], strides = [1, 1]} : vector<8x128xf32> to vector<8x32xf32>
    %149 = vector.extract_strided_slice %146 {offsets = [0, 64], sizes = [8, 32], strides = [1, 1]} : vector<8x128xf32> to vector<8x32xf32>
    %150 = vector.extract_strided_slice %145 {offsets = [0, 96], sizes = [8, 32], strides = [1, 1]} : vector<8x128xf32> to vector<8x32xf32>
    %151 = arith.mulf %148, %113 : vector<8x32xf32>
    %152 = arith.mulf %147, %149 : vector<8x32xf32>
    %153 = arith.addf %151, %152 : vector<8x32xf32>
    %154 = math.tanh %153 : vector<8x32xf32>
    %155 = arith.mulf %150, %154 : vector<8x32xf32>
    %156 = tpu.concatenate %155, %134 in 1 : vector<8x32xf32>, vector<8x32xf32> -> vector<8x64xf32>
    %cst_42 = arith.constant dense<0.000000e+00> : vector<8x128xf32>
    %157 = tpu.matmul %156, %14, %cst_42 {dimension_numbers = #tpu.dot_dimension_numbers<[1], [0], [0], [1], [0, 0, 1, 1], [], []>} : vector<8x64xf32>, vector<64x128xf32>, vector<8x128xf32> -> vector<8x128xf32>
    %158 = vector.broadcast %16 : vector<1x128xf32> to vector<8x128xf32>
    %159 = arith.addf %157, %158 : vector<8x128xf32>
    %160 = arith.negf %159 : vector<8x128xf32>
    %161 = math.exp %160 : vector<8x128xf32>
    %cst_43 = arith.constant 1.000000e+00 : f32
    %162 = vector.broadcast %cst_43 : f32 to vector<8x128xf32>
    %163 = arith.addf %162, %161 : vector<8x128xf32>
    %164 = arith.divf %162, %163 : vector<8x128xf32>
    %165 = math.tanh %159 : vector<8x128xf32>
    %166 = vector.extract_strided_slice %164 {offsets = [0, 0], sizes = [8, 32], strides = [1, 1]} : vector<8x128xf32> to vector<8x32xf32>
    %167 = vector.extract_strided_slice %164 {offsets = [0, 32], sizes = [8, 32], strides = [1, 1]} : vector<8x128xf32> to vector<8x32xf32>
    %168 = vector.extract_strided_slice %165 {offsets = [0, 64], sizes = [8, 32], strides = [1, 1]} : vector<8x128xf32> to vector<8x32xf32>
    %169 = vector.extract_strided_slice %164 {offsets = [0, 96], sizes = [8, 32], strides = [1, 1]} : vector<8x128xf32> to vector<8x32xf32>
    %170 = arith.mulf %167, %132 : vector<8x32xf32>
    %171 = arith.mulf %166, %168 : vector<8x32xf32>
    %172 = arith.addf %170, %171 : vector<8x32xf32>
    %173 = math.tanh %172 : vector<8x32xf32>
    %174 = arith.mulf %169, %173 : vector<8x32xf32>
    %175 = arith.index_cast %c3_i32 : i32 to index
    %c0_44 = arith.constant 0 : index
    %c0_45 = arith.constant 0 : index
    %176 = vector.load %arg15[%175, %c0_44, %c0_45] : memref<8x8x32xf32, #tpu.memory_space<vmem>>, vector<1x8x32xf32>
    %177 = vector.shape_cast %176 : vector<1x8x32xf32> to vector<8x32xf32>
    %178 = vector.shape_cast %174 : vector<8x32xf32> to vector<1x8x32xf32>
    tpu.vector_store %arg15[%175, %c0_44, %c0_45], %178 {strides = array<i32>} : memref<8x8x32xf32, #tpu.memory_space<vmem>>, vector<1x8x32xf32>,
    %c4_i32 = arith.constant 4 : i32
    %cst_46 = arith.constant dense<0.000000e+00> : vector<8x128xf32>
    %179 = tpu.matmul %155, %12, %cst_46 {dimension_numbers = #tpu.dot_dimension_numbers<[1], [0], [0], [1], [0, 0, 1, 1], [], []>} : vector<8x32xf32>, vector<32x128xf32>, vector<8x128xf32> -> vector<8x128xf32>
    %180 = arith.addf %11, %179 : vector<8x128xf32>
    %181 = arith.negf %180 : vector<8x128xf32>
    %182 = math.exp %181 : vector<8x128xf32>
    %cst_47 = arith.constant 1.000000e+00 : f32
    %183 = vector.broadcast %cst_47 : f32 to vector<8x128xf32>
    %184 = arith.addf %183, %182 : vector<8x128xf32>
    %185 = arith.divf %183, %184 : vector<8x128xf32>
    %186 = math.tanh %180 : vector<8x128xf32>
    %187 = vector.extract_strided_slice %185 {offsets = [0, 0], sizes = [8, 32], strides = [1, 1]} : vector<8x128xf32> to vector<8x32xf32>
    %188 = vector.extract_strided_slice %185 {offsets = [0, 32], sizes = [8, 32], strides = [1, 1]} : vector<8x128xf32> to vector<8x32xf32>
    %189 = vector.extract_strided_slice %186 {offsets = [0, 64], sizes = [8, 32], strides = [1, 1]} : vector<8x128xf32> to vector<8x32xf32>
    %190 = vector.extract_strided_slice %185 {offsets = [0, 96], sizes = [8, 32], strides = [1, 1]} : vector<8x128xf32> to vector<8x32xf32>
    %191 = arith.mulf %188, %153 : vector<8x32xf32>
    %192 = arith.mulf %187, %189 : vector<8x32xf32>
    %193 = arith.addf %191, %192 : vector<8x32xf32>
    %194 = math.tanh %193 : vector<8x32xf32>
    %195 = arith.mulf %190, %194 : vector<8x32xf32>
    %196 = tpu.concatenate %195, %174 in 1 : vector<8x32xf32>, vector<8x32xf32> -> vector<8x64xf32>
    %cst_48 = arith.constant dense<0.000000e+00> : vector<8x128xf32>
    %197 = tpu.matmul %196, %14, %cst_48 {dimension_numbers = #tpu.dot_dimension_numbers<[1], [0], [0], [1], [0, 0, 1, 1], [], []>} : vector<8x64xf32>, vector<64x128xf32>, vector<8x128xf32> -> vector<8x128xf32>
    %198 = vector.broadcast %16 : vector<1x128xf32> to vector<8x128xf32>
    %199 = arith.addf %197, %198 : vector<8x128xf32>
    %200 = arith.negf %199 : vector<8x128xf32>
    %201 = math.exp %200 : vector<8x128xf32>
    %cst_49 = arith.constant 1.000000e+00 : f32
    %202 = vector.broadcast %cst_49 : f32 to vector<8x128xf32>
    %203 = arith.addf %202, %201 : vector<8x128xf32>
    %204 = arith.divf %202, %203 : vector<8x128xf32>
    %205 = math.tanh %199 : vector<8x128xf32>
    %206 = vector.extract_strided_slice %204 {offsets = [0, 0], sizes = [8, 32], strides = [1, 1]} : vector<8x128xf32> to vector<8x32xf32>
    %207 = vector.extract_strided_slice %204 {offsets = [0, 32], sizes = [8, 32], strides = [1, 1]} : vector<8x128xf32> to vector<8x32xf32>
    %208 = vector.extract_strided_slice %205 {offsets = [0, 64], sizes = [8, 32], strides = [1, 1]} : vector<8x128xf32> to vector<8x32xf32>
    %209 = vector.extract_strided_slice %204 {offsets = [0, 96], sizes = [8, 32], strides = [1, 1]} : vector<8x128xf32> to vector<8x32xf32>
    %210 = arith.mulf %207, %172 : vector<8x32xf32>
    %211 = arith.mulf %206, %208 : vector<8x32xf32>
    %212 = arith.addf %210, %211 : vector<8x32xf32>
    %213 = math.tanh %212 : vector<8x32xf32>
    %214 = arith.mulf %209, %213 : vector<8x32xf32>
    %215 = arith.index_cast %c4_i32 : i32 to index
    %c0_50 = arith.constant 0 : index
    %c0_51 = arith.constant 0 : index
    %216 = vector.load %arg15[%215, %c0_50, %c0_51] : memref<8x8x32xf32, #tpu.memory_space<vmem>>, vector<1x8x32xf32>
    %217 = vector.shape_cast %216 : vector<1x8x32xf32> to vector<8x32xf32>
    %218 = vector.shape_cast %214 : vector<8x32xf32> to vector<1x8x32xf32>
    tpu.vector_store %arg15[%215, %c0_50, %c0_51], %218 {strides = array<i32>} : memref<8x8x32xf32, #tpu.memory_space<vmem>>, vector<1x8x32xf32>,
    %c5_i32 = arith.constant 5 : i32
    %cst_52 = arith.constant dense<0.000000e+00> : vector<8x128xf32>
    %219 = tpu.matmul %195, %12, %cst_52 {dimension_numbers = #tpu.dot_dimension_numbers<[1], [0], [0], [1], [0, 0, 1, 1], [], []>} : vector<8x32xf32>, vector<32x128xf32>, vector<8x128xf32> -> vector<8x128xf32>
    %220 = arith.addf %11, %219 : vector<8x128xf32>
    %221 = arith.negf %220 : vector<8x128xf32>
    %222 = math.exp %221 : vector<8x128xf32>
    %cst_53 = arith.constant 1.000000e+00 : f32
    %223 = vector.broadcast %cst_53 : f32 to vector<8x128xf32>
    %224 = arith.addf %223, %222 : vector<8x128xf32>
    %225 = arith.divf %223, %224 : vector<8x128xf32>
    %226 = math.tanh %220 : vector<8x128xf32>
    %227 = vector.extract_strided_slice %225 {offsets = [0, 0], sizes = [8, 32], strides = [1, 1]} : vector<8x128xf32> to vector<8x32xf32>
    %228 = vector.extract_strided_slice %225 {offsets = [0, 32], sizes = [8, 32], strides = [1, 1]} : vector<8x128xf32> to vector<8x32xf32>
    %229 = vector.extract_strided_slice %226 {offsets = [0, 64], sizes = [8, 32], strides = [1, 1]} : vector<8x128xf32> to vector<8x32xf32>
    %230 = vector.extract_strided_slice %225 {offsets = [0, 96], sizes = [8, 32], strides = [1, 1]} : vector<8x128xf32> to vector<8x32xf32>
    %231 = arith.mulf %228, %193 : vector<8x32xf32>
    %232 = arith.mulf %227, %229 : vector<8x32xf32>
    %233 = arith.addf %231, %232 : vector<8x32xf32>
    %234 = math.tanh %233 : vector<8x32xf32>
    %235 = arith.mulf %230, %234 : vector<8x32xf32>
    %236 = tpu.concatenate %235, %214 in 1 : vector<8x32xf32>, vector<8x32xf32> -> vector<8x64xf32>
    %cst_54 = arith.constant dense<0.000000e+00> : vector<8x128xf32>
    %237 = tpu.matmul %236, %14, %cst_54 {dimension_numbers = #tpu.dot_dimension_numbers<[1], [0], [0], [1], [0, 0, 1, 1], [], []>} : vector<8x64xf32>, vector<64x128xf32>, vector<8x128xf32> -> vector<8x128xf32>
    %238 = vector.broadcast %16 : vector<1x128xf32> to vector<8x128xf32>
    %239 = arith.addf %237, %238 : vector<8x128xf32>
    %240 = arith.negf %239 : vector<8x128xf32>
    %241 = math.exp %240 : vector<8x128xf32>
    %cst_55 = arith.constant 1.000000e+00 : f32
    %242 = vector.broadcast %cst_55 : f32 to vector<8x128xf32>
    %243 = arith.addf %242, %241 : vector<8x128xf32>
    %244 = arith.divf %242, %243 : vector<8x128xf32>
    %245 = math.tanh %239 : vector<8x128xf32>
    %246 = vector.extract_strided_slice %244 {offsets = [0, 0], sizes = [8, 32], strides = [1, 1]} : vector<8x128xf32> to vector<8x32xf32>
    %247 = vector.extract_strided_slice %244 {offsets = [0, 32], sizes = [8, 32], strides = [1, 1]} : vector<8x128xf32> to vector<8x32xf32>
    %248 = vector.extract_strided_slice %245 {offsets = [0, 64], sizes = [8, 32], strides = [1, 1]} : vector<8x128xf32> to vector<8x32xf32>
    %249 = vector.extract_strided_slice %244 {offsets = [0, 96], sizes = [8, 32], strides = [1, 1]} : vector<8x128xf32> to vector<8x32xf32>
    %250 = arith.mulf %247, %212 : vector<8x32xf32>
    %251 = arith.mulf %246, %248 : vector<8x32xf32>
    %252 = arith.addf %250, %251 : vector<8x32xf32>
    %253 = math.tanh %252 : vector<8x32xf32>
    %254 = arith.mulf %249, %253 : vector<8x32xf32>
    %255 = arith.index_cast %c5_i32 : i32 to index
    %c0_56 = arith.constant 0 : index
    %c0_57 = arith.constant 0 : index
    %256 = vector.load %arg15[%255, %c0_56, %c0_57] : memref<8x8x32xf32, #tpu.memory_space<vmem>>, vector<1x8x32xf32>
    %257 = vector.shape_cast %256 : vector<1x8x32xf32> to vector<8x32xf32>
    %258 = vector.shape_cast %254 : vector<8x32xf32> to vector<1x8x32xf32>
    tpu.vector_store %arg15[%255, %c0_56, %c0_57], %258 {strides = array<i32>} : memref<8x8x32xf32, #tpu.memory_space<vmem>>, vector<1x8x32xf32>,
    %c6_i32 = arith.constant 6 : i32
    %cst_58 = arith.constant dense<0.000000e+00> : vector<8x128xf32>
    %259 = tpu.matmul %235, %12, %cst_58 {dimension_numbers = #tpu.dot_dimension_numbers<[1], [0], [0], [1], [0, 0, 1, 1], [], []>} : vector<8x32xf32>, vector<32x128xf32>, vector<8x128xf32> -> vector<8x128xf32>
    %260 = arith.addf %11, %259 : vector<8x128xf32>
    %261 = arith.negf %260 : vector<8x128xf32>
    %262 = math.exp %261 : vector<8x128xf32>
    %cst_59 = arith.constant 1.000000e+00 : f32
    %263 = vector.broadcast %cst_59 : f32 to vector<8x128xf32>
    %264 = arith.addf %263, %262 : vector<8x128xf32>
    %265 = arith.divf %263, %264 : vector<8x128xf32>
    %266 = math.tanh %260 : vector<8x128xf32>
    %267 = vector.extract_strided_slice %265 {offsets = [0, 0], sizes = [8, 32], strides = [1, 1]} : vector<8x128xf32> to vector<8x32xf32>
    %268 = vector.extract_strided_slice %265 {offsets = [0, 32], sizes = [8, 32], strides = [1, 1]} : vector<8x128xf32> to vector<8x32xf32>
    %269 = vector.extract_strided_slice %266 {offsets = [0, 64], sizes = [8, 32], strides = [1, 1]} : vector<8x128xf32> to vector<8x32xf32>
    %270 = vector.extract_strided_slice %265 {offsets = [0, 96], sizes = [8, 32], strides = [1, 1]} : vector<8x128xf32> to vector<8x32xf32>
    %271 = arith.mulf %268, %233 : vector<8x32xf32>
    %272 = arith.mulf %267, %269 : vector<8x32xf32>
    %273 = arith.addf %271, %272 : vector<8x32xf32>
    %274 = math.tanh %273 : vector<8x32xf32>
    %275 = arith.mulf %270, %274 : vector<8x32xf32>
    %276 = tpu.concatenate %275, %254 in 1 : vector<8x32xf32>, vector<8x32xf32> -> vector<8x64xf32>
    %cst_60 = arith.constant dense<0.000000e+00> : vector<8x128xf32>
    %277 = tpu.matmul %276, %14, %cst_60 {dimension_numbers = #tpu.dot_dimension_numbers<[1], [0], [0], [1], [0, 0, 1, 1], [], []>} : vector<8x64xf32>, vector<64x128xf32>, vector<8x128xf32> -> vector<8x128xf32>
    %278 = vector.broadcast %16 : vector<1x128xf32> to vector<8x128xf32>
    %279 = arith.addf %277, %278 : vector<8x128xf32>
    %280 = arith.negf %279 : vector<8x128xf32>
    %281 = math.exp %280 : vector<8x128xf32>
    %cst_61 = arith.constant 1.000000e+00 : f32
    %282 = vector.broadcast %cst_61 : f32 to vector<8x128xf32>
    %283 = arith.addf %282, %281 : vector<8x128xf32>
    %284 = arith.divf %282, %283 : vector<8x128xf32>
    %285 = math.tanh %279 : vector<8x128xf32>
    %286 = vector.extract_strided_slice %284 {offsets = [0, 0], sizes = [8, 32], strides = [1, 1]} : vector<8x128xf32> to vector<8x32xf32>
    %287 = vector.extract_strided_slice %284 {offsets = [0, 32], sizes = [8, 32], strides = [1, 1]} : vector<8x128xf32> to vector<8x32xf32>
    %288 = vector.extract_strided_slice %285 {offsets = [0, 64], sizes = [8, 32], strides = [1, 1]} : vector<8x128xf32> to vector<8x32xf32>
    %289 = vector.extract_strided_slice %284 {offsets = [0, 96], sizes = [8, 32], strides = [1, 1]} : vector<8x128xf32> to vector<8x32xf32>
    %290 = arith.mulf %287, %252 : vector<8x32xf32>
    %291 = arith.mulf %286, %288 : vector<8x32xf32>
    %292 = arith.addf %290, %291 : vector<8x32xf32>
    %293 = math.tanh %292 : vector<8x32xf32>
    %294 = arith.mulf %289, %293 : vector<8x32xf32>
    %295 = arith.index_cast %c6_i32 : i32 to index
    %c0_62 = arith.constant 0 : index
    %c0_63 = arith.constant 0 : index
    %296 = vector.load %arg15[%295, %c0_62, %c0_63] : memref<8x8x32xf32, #tpu.memory_space<vmem>>, vector<1x8x32xf32>
    %297 = vector.shape_cast %296 : vector<1x8x32xf32> to vector<8x32xf32>
    %298 = vector.shape_cast %294 : vector<8x32xf32> to vector<1x8x32xf32>
    tpu.vector_store %arg15[%295, %c0_62, %c0_63], %298 {strides = array<i32>} : memref<8x8x32xf32, #tpu.memory_space<vmem>>, vector<1x8x32xf32>,
    %c7_i32 = arith.constant 7 : i32
    %cst_64 = arith.constant dense<0.000000e+00> : vector<8x128xf32>
    %299 = tpu.matmul %275, %12, %cst_64 {dimension_numbers = #tpu.dot_dimension_numbers<[1], [0], [0], [1], [0, 0, 1, 1], [], []>} : vector<8x32xf32>, vector<32x128xf32>, vector<8x128xf32> -> vector<8x128xf32>
    %300 = arith.addf %11, %299 : vector<8x128xf32>
    %301 = arith.negf %300 : vector<8x128xf32>
    %302 = math.exp %301 : vector<8x128xf32>
    %cst_65 = arith.constant 1.000000e+00 : f32
    %303 = vector.broadcast %cst_65 : f32 to vector<8x128xf32>
    %304 = arith.addf %303, %302 : vector<8x128xf32>
    %305 = arith.divf %303, %304 : vector<8x128xf32>
    %306 = math.tanh %300 : vector<8x128xf32>
    %307 = vector.extract_strided_slice %305 {offsets = [0, 0], sizes = [8, 32], strides = [1, 1]} : vector<8x128xf32> to vector<8x32xf32>
    %308 = vector.extract_strided_slice %305 {offsets = [0, 32], sizes = [8, 32], strides = [1, 1]} : vector<8x128xf32> to vector<8x32xf32>
    %309 = vector.extract_strided_slice %306 {offsets = [0, 64], sizes = [8, 32], strides = [1, 1]} : vector<8x128xf32> to vector<8x32xf32>
    %310 = vector.extract_strided_slice %305 {offsets = [0, 96], sizes = [8, 32], strides = [1, 1]} : vector<8x128xf32> to vector<8x32xf32>
    %311 = arith.mulf %308, %273 : vector<8x32xf32>
    %312 = arith.mulf %307, %309 : vector<8x32xf32>
    %313 = arith.addf %311, %312 : vector<8x32xf32>
    %314 = math.tanh %313 : vector<8x32xf32>
    %315 = arith.mulf %310, %314 : vector<8x32xf32>
    %316 = tpu.concatenate %315, %294 in 1 : vector<8x32xf32>, vector<8x32xf32> -> vector<8x64xf32>
    %cst_66 = arith.constant dense<0.000000e+00> : vector<8x128xf32>
    %317 = tpu.matmul %316, %14, %cst_66 {dimension_numbers = #tpu.dot_dimension_numbers<[1], [0], [0], [1], [0, 0, 1, 1], [], []>} : vector<8x64xf32>, vector<64x128xf32>, vector<8x128xf32> -> vector<8x128xf32>
    %318 = vector.broadcast %16 : vector<1x128xf32> to vector<8x128xf32>
    %319 = arith.addf %317, %318 : vector<8x128xf32>
    %320 = arith.negf %319 : vector<8x128xf32>
    %321 = math.exp %320 : vector<8x128xf32>
    %cst_67 = arith.constant 1.000000e+00 : f32
    %322 = vector.broadcast %cst_67 : f32 to vector<8x128xf32>
    %323 = arith.addf %322, %321 : vector<8x128xf32>
    %324 = arith.divf %322, %323 : vector<8x128xf32>
    %325 = math.tanh %319 : vector<8x128xf32>
    %326 = vector.extract_strided_slice %324 {offsets = [0, 0], sizes = [8, 32], strides = [1, 1]} : vector<8x128xf32> to vector<8x32xf32>
    %327 = vector.extract_strided_slice %324 {offsets = [0, 32], sizes = [8, 32], strides = [1, 1]} : vector<8x128xf32> to vector<8x32xf32>
    %328 = vector.extract_strided_slice %325 {offsets = [0, 64], sizes = [8, 32], strides = [1, 1]} : vector<8x128xf32> to vector<8x32xf32>
    %329 = vector.extract_strided_slice %324 {offsets = [0, 96], sizes = [8, 32], strides = [1, 1]} : vector<8x128xf32> to vector<8x32xf32>
    %330 = arith.mulf %327, %292 : vector<8x32xf32>
    %331 = arith.mulf %326, %328 : vector<8x32xf32>
    %332 = arith.addf %330, %331 : vector<8x32xf32>
    %333 = math.tanh %332 : vector<8x32xf32>
    %334 = arith.mulf %329, %333 : vector<8x32xf32>
    %335 = arith.index_cast %c7_i32 : i32 to index
    %c0_68 = arith.constant 0 : index
    %c0_69 = arith.constant 0 : index
    %336 = vector.load %arg15[%335, %c0_68, %c0_69] : memref<8x8x32xf32, #tpu.memory_space<vmem>>, vector<1x8x32xf32>
    %337 = vector.shape_cast %336 : vector<1x8x32xf32> to vector<8x32xf32>
    %338 = vector.shape_cast %334 : vector<8x32xf32> to vector<1x8x32xf32>
    tpu.vector_store %arg15[%335, %c0_68, %c0_69], %338 {strides = array<i32>} : memref<8x8x32xf32, #tpu.memory_space<vmem>>, vector<1x8x32xf32>,
    %c8_i32 = arith.constant 8 : i32
    %c0_70 = arith.constant 0 : index
    %c0_71 = arith.constant 0 : index
    %c0_72 = arith.constant 0 : index
    %339 = vector.load %arg15[%c0_70, %c0_71, %c0_72] : memref<8x8x32xf32, #tpu.memory_space<vmem>>, vector<8x8x32xf32>
    %340 = vector.shape_cast %339 : vector<8x8x32xf32> to vector<64x32xf32>
    %c0_73 = arith.constant 0 : index
    %c0_74 = arith.constant 0 : index
    %341 = vector.load %arg8[%c0_73, %c0_74] : memref<32x16xf32, #tpu.memory_space<vmem>>, vector<32x16xf32>
    %cst_75 = arith.constant dense<0.000000e+00> : vector<64x16xf32>
    %342 = tpu.matmul %340, %341, %cst_75 {dimension_numbers = #tpu.dot_dimension_numbers<[1], [0], [0], [1], [0, 0, 1, 1], [], []>} : vector<64x32xf32>, vector<32x16xf32>, vector<64x16xf32> -> vector<64x16xf32>
    %c0_76 = arith.constant 0 : index
    %c0_77 = arith.constant 0 : index
    %343 = vector.load %arg9[%c0_76, %c0_77] : memref<1x16xf32, #tpu.memory_space<vmem>>, vector<1x16xf32>
    %344 = vector.broadcast %343 : vector<1x16xf32> to vector<64x16xf32>
    %345 = arith.addf %342, %344 : vector<64x16xf32>
    %346 = vector.shape_cast %345 : vector<64x16xf32> to vector<8x8x16xf32>
    %c0_78 = arith.constant 0 : index
    %c0_79 = arith.constant 0 : index
    %c0_80 = arith.constant 0 : index
    %347 = vector.load %arg13[%c0_78, %c0_79, %c0_80] : memref<8x8x16xf32, #tpu.memory_space<vmem>>, vector<8x8x16xf32>
    tpu.vector_store %arg13[%c0_78, %c0_79, %c0_80], %346 {strides = array<i32>} : memref<8x8x16xf32, #tpu.memory_space<vmem>>, vector<8x8x16xf32>,
    %c0_81 = arith.constant 0 : index
    %c0_82 = arith.constant 0 : index
    %348 = vector.load %arg10[%c0_81, %c0_82] : memref<16x4xf32, #tpu.memory_space<vmem>>, vector<16x4xf32>
    %cst_83 = arith.constant dense<0.000000e+00> : vector<64x4xf32>
    %349 = tpu.matmul %345, %348, %cst_83 {dimension_numbers = #tpu.dot_dimension_numbers<[1], [0], [0], [1], [0, 0, 1, 1], [], []>} : vector<64x16xf32>, vector<16x4xf32>, vector<64x4xf32> -> vector<64x4xf32>
    %c0_84 = arith.constant 0 : index
    %c0_85 = arith.constant 0 : index
    %350 = vector.load %arg11[%c0_84, %c0_85] : memref<1x4xf32, #tpu.memory_space<vmem>>, vector<1x4xf32>
    %351 = vector.broadcast %350 : vector<1x4xf32> to vector<64x4xf32>
    %352 = arith.addf %349, %351 : vector<64x4xf32>
    %353 = vector.shape_cast %352 : vector<64x4xf32> to vector<8x8x4xf32>
    %c0_86 = arith.constant 0 : index
    %c0_87 = arith.constant 0 : index
    %c0_88 = arith.constant 0 : index
    %354 = vector.load %arg14[%c0_86, %c0_87, %c0_88] : memref<8x8x4xf32, #tpu.memory_space<vmem>>, vector<8x8x4xf32>
    tpu.vector_store %arg14[%c0_86, %c0_87, %c0_88], %353 {strides = array<i32>} : memref<8x8x4xf32, #tpu.memory_space<vmem>>, vector<8x8x4xf32>,
    return
  }
}

</mosaic_0001>

<llo_original>
// kernel: tpu_custom_call.1
$region0: #{tpu_custom_call.1}
  #allocation0 [shape = 'u32[]', space=smem, size = 0x4, offset = 0x4, fixed_abs, tag = 'smem constant byte address 0x4 - core index']
  #allocation1 [shape = 'u32[144,128]{1,0:T(1,128)}', space=vmem, size = 0x12000, scoped, tag = 'internal scratch']
  #allocation2 [shape = 'f32[8,8,32]{2,1,0:T(8,128)}', space=vmem, size = 0x8000, scoped, tag = 'scratch operand']
  %s0 = inlined_call_operand.hbm [shape: f32[8,16], index: 0, kind: input, shape index: {}]
  %s1 = inlined_call_operand.hbm [shape: f32[16,32], index: 1, kind: input, shape index: {}]
  %s2 = inlined_call_operand.hbm [shape: f32[1,32], index: 2, kind: input, shape index: {}]
  %s3 = inlined_call_operand.hbm [shape: f32[32,128], index: 3, kind: input, shape index: {}]
  %s4 = inlined_call_operand.hbm [shape: f32[32,128], index: 4, kind: input, shape index: {}]
  %s5 = inlined_call_operand.hbm [shape: f32[1,128], index: 5, kind: input, shape index: {}]
  %s6 = inlined_call_operand.vmem [shape: f32[1,64,128], index: 6, kind: input, shape index: {}]
  %s7 = inlined_call_operand.hbm [shape: f32[1,1,128], index: 7, kind: input, shape index: {}]
  %s8 = inlined_call_operand.vmem [shape: f32[32,16], index: 8, kind: input, shape index: {}]
  %s9 = inlined_call_operand.hbm [shape: f32[1,16], index: 9, kind: input, shape index: {}]
  %s10 = inlined_call_operand.vmem [shape: f32[16,4], index: 10, kind: input, shape index: {}]
  %s11 = inlined_call_operand.vmem [shape: f32[1,4], index: 11, kind: input, shape index: {}]
  %s12 = inlined_call_operand.hbm [shape: f32[8,32], index: 12, kind: output, shape index: {0}]
  %s13 = inlined_call_operand.hbm [shape: f32[8,8,16], index: 13, kind: output, shape index: {1}]
  %s14 = inlined_call_operand.vmem [shape: f32[8,8,4], index: 14, kind: output, shape index: {2}]
  %15 = xla_tuple %s12, %s13, %s14
  %s16 = sld [smem:[#allocation0]]
  $region106: #{tpu_custom_call.1} parent=0
    _
  %s18 = ssub.s32 1, %s16
  %s19 = scalar_select 0, %s18, %s16
  $region1: #{tpu_custom_call.1} parent=0
    #allocation3 [shape = 'u8[4096]{0}', space=vmem, size = 0x1000, scoped, tag = 'input window, operand 0, single buffered']
    #allocation4 [shape = 's32[1]{0}', space=sflag, size = 0x4, scoped, tag = 'scoped memory for tpu_custom_call.1']
    #allocation5 [shape = 's32[1]{0}', space=sflag, size = 0x4, scoped, tag = 'scoped memory for tpu_custom_call.1']
    #allocation6 [shape = 'u8[8192]{0}', space=vmem, size = 0x2000, scoped, tag = 'input window, operand 1, single buffered']
    #allocation7 [shape = 's32[1]{0}', space=sflag, size = 0x4, scoped, tag = 'scoped memory for tpu_custom_call.1']
    #allocation8 [shape = 'u8[512]{0}', space=vmem, size = 0x400, scoped, tag = 'input window, operand 2, single buffered']
    #allocation9 [shape = 'u8[16384]{0}', space=vmem, size = 0x4000, scoped, tag = 'input window, operand 3, single buffered']
    #allocation10 [shape = 's32[1]{0}', space=sflag, size = 0x4, scoped, tag = 'scoped memory for tpu_custom_call.1']
    #allocation11 [shape = 'u8[16384]{0}', space=vmem, size = 0x4000, scoped, tag = 'input window, operand 4, single buffered']
    #allocation12 [shape = 'u8[512]{0}', space=vmem, size = 0x400, scoped, tag = 'input window, operand 5, single buffered']
    #allocation13 [shape = 's32[1]{0}', space=sflag, size = 0x4, scoped, tag = 'scoped memory for tpu_custom_call.1']
    #allocation14 [shape = 'u8[512]{0}', space=vmem, size = 0x400, scoped, tag = 'input window, operand 7, single buffered']
    #allocation15 [shape = 'u8[512]{0}', space=vmem, size = 0x400, scoped, tag = 'input window, operand 9, single buffered']
    #allocation16 [shape = 's32[1]{0}', space=sflag, size = 0x4, scoped, tag = 'scoped memory for tpu_custom_call.1']
    #allocation17 [shape = 'u8[4096]{0}', space=vmem, size = 0x1000, scoped, tag = 'output window, operand 0, single buffered']
    #allocation18 [shape = 'u8[32768]{0}', space=vmem, size = 0x8000, scoped, tag = 'output window, operand 1, single buffered']
    #allocation19 [shape = 's32[1]{0}', space=sflag, size = 0x4, scoped, tag = 'scoped memory for tpu_custom_call.1']
    %20 = vsyncpa [#allocation4], 0
    %21 = vsyncpa [#allocation7], 0
    %22 = vsyncpa [#allocation10], 0
    %23 = vsyncpa [#allocation13], 0
    %24 = vsyncpa [#allocation16], 0
    %25 = vsyncpa [#allocation5], 0
    %26 = vsyncpa [#allocation19], 0
    // Predicated region
    $region2: #{tpu_custom_call.1} parent=1 // pred_check
      _
    $region3: #{tpu_custom_call.1} parent=1 // pred_check_branch
      %28 = sbr.rel (0) target = $region5
    $region4: #{tpu_custom_call.1} parent=1 // pred_region
      %s30 = ssub.s32 128, 128
      %31 = vsyncadd [#allocation4], %s30
      %s33 = sshll.u32 [#allocation3], 4
      %s34 = int_to_ptr.vmem [resolvable:$true] %s33
      %36 = dma.hbm_to_vmem [thread:$0]  %s0, 128, %s34, [#allocation4]
    $region5: #{tpu_custom_call.1} parent=1 // pred_fallthru
      _
    // Predicated region
    $region6: #{tpu_custom_call.1} parent=1 // pred_check
      _
    $region7: #{tpu_custom_call.1} parent=1 // pred_check_branch
      %38 = sbr.rel (0) target = $region9
    $region8: #{tpu_custom_call.1} parent=1 // pred_region
      %s40 = ssub.s32 256, 256
      %41 = vsyncadd [#allocation7], %s40
      %s42 = sshll.u32 [#allocation6], 4
      %s43 = int_to_ptr.vmem [resolvable:$true] %s42
      %48 = dma.hbm_to_vmem [thread:$0]  %s1, 256, %s43, [#allocation7], 128, 128, 8
    $region9: #{tpu_custom_call.1} parent=1 // pred_fallthru
      _
    // Predicated region
    $region10: #{tpu_custom_call.1} parent=1 // pred_check
      _
    $region11: #{tpu_custom_call.1} parent=1 // pred_check_branch
      %50 = sbr.rel (0) target = $region13
    $region12: #{tpu_custom_call.1} parent=1 // pred_region
      %s52 = ssub.s32 16, 16
      %53 = vsyncadd [#allocation7], %s52
      %s55 = sshll.u32 [#allocation8], 4
      %s56 = int_to_ptr.vmem [resolvable:$true] %s55
      %58 = dma.hbm_to_vmem [thread:$0]  %s2, 16, %s56, [#allocation7]
    $region13: #{tpu_custom_call.1} parent=1 // pred_fallthru
      _
    // Predicated region
    $region14: #{tpu_custom_call.1} parent=1 // pred_check
      _
    $region15: #{tpu_custom_call.1} parent=1 // pred_check_branch
      %60 = sbr.rel (0) target = $region17
    $region16: #{tpu_custom_call.1} parent=1 // pred_region
      %s62 = ssub.s32 512, 512
      %63 = vsyncadd [#allocation10], %s62
      %s64 = sshll.u32 [#allocation9], 4
      %s65 = int_to_ptr.vmem [resolvable:$true] %s64
      %70 = dma.hbm_to_vmem [thread:$0]  %s3, 512, %s65, [#allocation10], 128, 128, 8
    $region17: #{tpu_custom_call.1} parent=1 // pred_fallthru
      _
    // Predicated region
    $region18: #{tpu_custom_call.1} parent=1 // pred_check
      _
    $region19: #{tpu_custom_call.1} parent=1 // pred_check_branch
      %72 = sbr.rel (0) target = $region21
    $region20: #{tpu_custom_call.1} parent=1 // pred_region
      %s74 = ssub.s32 512, 512
      %75 = vsyncadd [#allocation10], %s74
      %s76 = sshll.u32 [#allocation11], 4
      %s77 = int_to_ptr.vmem [resolvable:$true] %s76
      %82 = dma.hbm_to_vmem [thread:$0]  %s4, 512, %s77, [#allocation10], 128, 128, 8
    $region21: #{tpu_custom_call.1} parent=1 // pred_fallthru
      _
    // Predicated region
    $region22: #{tpu_custom_call.1} parent=1 // pred_check
      _
    $region23: #{tpu_custom_call.1} parent=1 // pred_check_branch
      %84 = sbr.rel (0) target = $region25
    $region24: #{tpu_custom_call.1} parent=1 // pred_region
      %s86 = ssub.s32 16, 16
      %87 = vsyncadd [#allocation13], %s86
      %s89 = sshll.u32 [#allocation12], 4
      %s90 = int_to_ptr.vmem [resolvable:$true] %s89
      %92 = dma.hbm_to_vmem [thread:$0]  %s5, 16, %s90, [#allocation13]
    $region25: #{tpu_custom_call.1} parent=1 // pred_fallthru
      _
    // Predicated region
    $region26: #{tpu_custom_call.1} parent=1 // pred_check
      _
    $region27: #{tpu_custom_call.1} parent=1 // pred_check_branch
      %94 = sbr.rel (0) target = $region29
    $region28: #{tpu_custom_call.1} parent=1 // pred_region
      _
    $region29: #{tpu_custom_call.1} parent=1 // pred_fallthru
      _
    // Predicated region
    $region30: #{tpu_custom_call.1} parent=1 // pred_check
      _
    $region31: #{tpu_custom_call.1} parent=1 // pred_check_branch
      %96 = sbr.rel (0) target = $region33
    $region32: #{tpu_custom_call.1} parent=1 // pred_region
      %s98 = ssub.s32 16, 16
      %99 = vsyncadd [#allocation13], %s98
      %s101 = sshll.u32 [#allocation14], 4
      %s102 = int_to_ptr.vmem [resolvable:$true] %s101
      %104 = dma.hbm_to_vmem [thread:$0]  %s7, 16, %s102, [#allocation13]
    $region33: #{tpu_custom_call.1} parent=1 // pred_fallthru
      _
    // Predicated region
    $region34: #{tpu_custom_call.1} parent=1 // pred_check
      _
    $region35: #{tpu_custom_call.1} parent=1 // pred_check_branch
      %106 = sbr.rel (0) target = $region37
    $region36: #{tpu_custom_call.1} parent=1 // pred_region
      _
    $region37: #{tpu_custom_call.1} parent=1 // pred_fallthru
      _
    // Predicated region
    $region38: #{tpu_custom_call.1} parent=1 // pred_check
      _
    $region39: #{tpu_custom_call.1} parent=1 // pred_check_branch
      %108 = sbr.rel (0) target = $region41
    $region40: #{tpu_custom_call.1} parent=1 // pred_region
      %s110 = ssub.s32 16, 16
      %111 = vsyncadd [#allocation16], %s110
      %s113 = sshll.u32 [#allocation15], 4
      %s114 = int_to_ptr.vmem [resolvable:$true] %s113
      %116 = dma.hbm_to_vmem [thread:$0]  %s9, 16, %s114, [#allocation16]
    $region41: #{tpu_custom_call.1} parent=1 // pred_fallthru
      _
    // Predicated region
    $region42: #{tpu_custom_call.1} parent=1 // pred_check
      _
    $region43: #{tpu_custom_call.1} parent=1 // pred_check_branch
      %118 = sbr.rel (0) target = $region45
    $region44: #{tpu_custom_call.1} parent=1 // pred_region
      _
    $region45: #{tpu_custom_call.1} parent=1 // pred_fallthru
      _
    // Predicated region
    $region46: #{tpu_custom_call.1} parent=1 // pred_check
      _
    $region47: #{tpu_custom_call.1} parent=1 // pred_check_branch
      %120 = sbr.rel (0) target = $region49
    $region48: #{tpu_custom_call.1} parent=1 // pred_region
      _
    $region49: #{tpu_custom_call.1} parent=1 // pred_fallthru
      _
    // Predicated region
    $region50: #{tpu_custom_call.1} parent=1 // pred_check
      _
    $region51: #{tpu_custom_call.1} parent=1 // pred_check_branch
      %122 = sbr.rel (0) target = $region53
    $region52: #{tpu_custom_call.1} parent=1 // pred_region
      %123 = dma.done [#allocation4], 128
    $region53: #{tpu_custom_call.1} parent=1 // pred_fallthru
      _
    // Predicated region
    $region54: #{tpu_custom_call.1} parent=1 // pred_check
      _
    $region55: #{tpu_custom_call.1} parent=1 // pred_check_branch
      %125 = sbr.rel (0) target = $region57
    $region56: #{tpu_custom_call.1} parent=1 // pred_region
      %126 = dma.done [#allocation7], 256
    $region57: #{tpu_custom_call.1} parent=1 // pred_fallthru
      _
    // Predicated region
    $region58: #{tpu_custom_call.1} parent=1 // pred_check
      _
    $region59: #{tpu_custom_call.1} parent=1 // pred_check_branch
      %128 = sbr.rel (0) target = $region61
    $region60: #{tpu_custom_call.1} parent=1 // pred_region
      %129 = dma.done [#allocation7], 16
    $region61: #{tpu_custom_call.1} parent=1 // pred_fallthru
      _
    // Predicated region
    $region62: #{tpu_custom_call.1} parent=1 // pred_check
      _
    $region63: #{tpu_custom_call.1} parent=1 // pred_check_branch
      %131 = sbr.rel (0) target = $region65
    $region64: #{tpu_custom_call.1} parent=1 // pred_region
      %132 = dma.done [#allocation10], 512
    $region65: #{tpu_custom_call.1} parent=1 // pred_fallthru
      _
    // Predicated region
    $region66: #{tpu_custom_call.1} parent=1 // pred_check
      _
    $region67: #{tpu_custom_call.1} parent=1 // pred_check_branch
      %134 = sbr.rel (0) target = $region69
    $region68: #{tpu_custom_call.1} parent=1 // pred_region
      %135 = dma.done [#allocation10], 512
    $region69: #{tpu_custom_call.1} parent=1 // pred_fallthru
      _
    // Predicated region
    $region70: #{tpu_custom_call.1} parent=1 // pred_check
      _
    $region71: #{tpu_custom_call.1} parent=1 // pred_check_branch
      %137 = sbr.rel (0) target = $region73
    $region72: #{tpu_custom_call.1} parent=1 // pred_region
      %138 = dma.done [#allocation13], 16
    $region73: #{tpu_custom_call.1} parent=1 // pred_fallthru
      _
    // Predicated region
    $region74: #{tpu_custom_call.1} parent=1 // pred_check
      _
    $region75: #{tpu_custom_call.1} parent=1 // pred_check_branch
      %140 = sbr.rel (0) target = $region77
    $region76: #{tpu_custom_call.1} parent=1 // pred_region
      %141 = dma.done [#allocation13], 16
    $region77: #{tpu_custom_call.1} parent=1 // pred_fallthru
      _
    // Predicated region
    $region78: #{tpu_custom_call.1} parent=1 // pred_check
      _
    $region79: #{tpu_custom_call.1} parent=1 // pred_check_branch
      %143 = sbr.rel (0) target = $region81
    $region80: #{tpu_custom_call.1} parent=1 // pred_region
      %144 = dma.done [#allocation16], 16
    $region81: #{tpu_custom_call.1} parent=1 // pred_fallthru
      _
    %v145 = vld [vmem:[#allocation3] sm:$0xff]
    %v146 = vld [vmem:[#allocation6] sm:$0xff]
    %v147 = vld [vmem:[#allocation6 + $0x8] sm:$0xff]
    %v148 = vld [vmem:[#allocation8] sm:$0x1]
    %v150 = vlaneseq
    %v151 = vshrl.u32 %v150, 7
    %v152 = vsub.s32 0, %v151
    %v153 = vrot.slane %v148, %v152
    %vm155 = vcmask 130048
    %v157 = vsel %vm155, %v145, 0
    %159 = vmatprep.subr.mxu0 0.0
    %160 = vmatpush1.msra.mxu0 0.0
    %161 = vmatprep.subr.mxu0 0.0
    %162 = vmatpush1.msra.mxu0 0.0
    %163 = vmatprep.subr.mxu0 0.0
    %164 = vmatpush1.msra.mxu0 0.0
    %165 = vmatprep.subr.mxu0 0.0
    %166 = vmatpush1.msra.mxu0 0.0
    %167 = vmatprep.subr.mxu0 0.0
    %168 = vmatpush1.msra.mxu0 0.0
    %169 = vmatprep.subr.mxu0 0.0
    %170 = vmatpush1.msra.mxu0 0.0
    %171 = vmatprep.subr.mxu0 0.0
    %172 = vmatpush1.msra.mxu0 0.0
    %173 = vmatprep.subr.mxu0 0.0
    %174 = vmatpush1.msra.mxu0 0.0
    %175 = vmatprep.subr.mxu0 0.0
    %176 = vmatpush1.msra.mxu0 0.0
    %177 = vmatprep.subr.mxu0 0.0
    %178 = vmatpush1.msra.mxu0 0.0
    %179 = vmatprep.subr.mxu0 0.0
    %180 = vmatpush1.msra.mxu0 0.0
    %181 = vmatprep.subr.mxu0 0.0
    %182 = vmatpush1.msra.mxu0 0.0
    %183 = vmatprep.subr.mxu0 0.0
    %184 = vmatpush1.msra.mxu0 0.0
    %185 = vmatprep.subr.mxu0 0.0
    %186 = vmatpush1.msra.mxu0 0.0
    %187 = vmatprep.subr.mxu0 0.0
    %188 = vmatpush1.msra.mxu0 %v147
    %189 = vmatprep.subr.mxu0 0.0
    %190 = vmatpush1.msra.mxu0 %v146
    %191 = vmatprep.subr.mxu0 0.0
    %192 = vmatpush2.msra.mxu0 0.0
    %193 = vmatprep.subr.mxu0 0.0
    %194 = vmatpush2.msra.mxu0 0.0
    %195 = vmatprep.subr.mxu0 0.0
    %196 = vmatpush2.msra.mxu0 0.0
    %197 = vmatprep.subr.mxu0 0.0
    %198 = vmatpush2.msra.mxu0 0.0
    %199 = vmatprep.subr.mxu0 0.0
    %200 = vmatpush2.msra.mxu0 0.0
    %201 = vmatprep.subr.mxu0 0.0
    %202 = vmatpush2.msra.mxu0 0.0
    %203 = vmatprep.subr.mxu0 0.0
    %204 = vmatpush2.msra.mxu0 0.0
    %205 = vmatprep.subr.mxu0 0.0
    %206 = vmatpush2.msra.mxu0 0.0
    %207 = vmatprep.subr.mxu0 0.0
    %208 = vmatpush2.msra.mxu0 0.0
    %209 = vmatprep.subr.mxu0 0.0
    %210 = vmatpush2.msra.mxu0 0.0
    %211 = vmatprep.subr.mxu0 0.0
    %212 = vmatpush2.msra.mxu0 0.0
    %213 = vmatprep.subr.mxu0 0.0
    %214 = vmatpush2.msra.mxu0 0.0
    %215 = vmatprep.subr.mxu0 0.0
    %216 = vmatpush2.msra.mxu0 0.0
    %217 = vmatprep.subr.mxu0 0.0
    %218 = vmatpush2.msra.mxu0 0.0
    %219 = vmatprep.subr.mxu0 0.0
    %220 = vmatpush2.msra.mxu0 0.0
    %221 = vmatprep.subr.mxu0 0.0
    %222 = vmatpush2.msra.mxu0 0.0
    %223 = vmatprep.mubr.f32.mxu0 0.0
    %224 = vmatmul.mubr.f32.gmra.mxu0 %v157
    %v225 = vpop.f32.mrf.mxu0
    %v226 = vadd.f32 %v153, %v225
    %v227 = vpop.f32.mrf.mxu0
    %228 = vdwg.mxu0
    %vm229 = vcmask 261120
    %230 = vst.msk [vmem:[#allocation17] sm:$0xff] %vm229, %v226
    %v231 = vld [vmem:[#allocation9] sm:$0xff]
    %v232 = vld [vmem:[#allocation9 + $0x8] sm:$0xff]
    %v233 = vld [vmem:[#allocation9 + $0x10] sm:$0xff]
    %v234 = vld [vmem:[#allocation9 + $0x18] sm:$0xff]
    %v235 = vld [vmem:[#allocation12] sm:$0x1]
    %v237 = vlaneseq
    %v238 = vshrl.u32 %v237, 7
    %v239 = vsub.s32 0, %v238
    %v240 = vrot.slane %v235, %v239
    %v243 = vsel %vm229, %v226, 0
    %245 = vmatprep.subr.mxu0 0.0
    %246 = vmatpush1.msra.mxu0 0.0
    %247 = vmatprep.subr.mxu0 0.0
    %248 = vmatpush1.msra.mxu0 0.0
    %249 = vmatprep.subr.mxu0 0.0
    %250 = vmatpush1.msra.mxu0 0.0
    %251 = vmatprep.subr.mxu0 0.0
    %252 = vmatpush1.msra.mxu0 0.0
    %253 = vmatprep.subr.mxu0 0.0
    %254 = vmatpush1.msra.mxu0 0.0
    %255 = vmatprep.subr.mxu0 0.0
    %256 = vmatpush1.msra.mxu0 0.0
    %257 = vmatprep.subr.mxu0 0.0
    %258 = vmatpush1.msra.mxu0 0.0
    %259 = vmatprep.subr.mxu0 0.0
    %260 = vmatpush1.msra.mxu0 0.0
    %261 = vmatprep.subr.mxu0 0.0
    %262 = vmatpush1.msra.mxu0 0.0
    %263 = vmatprep.subr.mxu0 0.0
    %264 = vmatpush1.msra.mxu0 0.0
    %265 = vmatprep.subr.mxu0 0.0
    %266 = vmatpush1.msra.mxu0 0.0
    %267 = vmatprep.subr.mxu0 0.0
    %268 = vmatpush1.msra.mxu0 0.0
    %269 = vmatprep.subr.mxu0 0.0
    %270 = vmatpush1.msra.mxu0 %v234
    %271 = vmatprep.subr.mxu0 0.0
    %272 = vmatpush1.msra.mxu0 %v233
    %273 = vmatprep.subr.mxu0 0.0
    %274 = vmatpush1.msra.mxu0 %v232
    %275 = vmatprep.subr.mxu0 0.0
    %276 = vmatpush1.msra.mxu0 %v231
    %277 = vmatprep.subr.mxu0 0.0
    %278 = vmatpush2.msra.mxu0 0.0
    %279 = vmatprep.subr.mxu0 0.0
    %280 = vmatpush2.msra.mxu0 0.0
    %281 = vmatprep.subr.mxu0 0.0
    %282 = vmatpush2.msra.mxu0 0.0
    %283 = vmatprep.subr.mxu0 0.0
    %284 = vmatpush2.msra.mxu0 0.0
    %285 = vmatprep.subr.mxu0 0.0
    %286 = vmatpush2.msra.mxu0 0.0
    %287 = vmatprep.subr.mxu0 0.0
    %288 = vmatpush2.msra.mxu0 0.0
    %289 = vmatprep.subr.mxu0 0.0
    %290 = vmatpush2.msra.mxu0 0.0
    %291 = vmatprep.subr.mxu0 0.0
    %292 = vmatpush2.msra.mxu0 0.0
    %293 = vmatprep.subr.mxu0 0.0
    %294 = vmatpush2.msra.mxu0 0.0
    %295 = vmatprep.subr.mxu0 0.0
    %296 = vmatpush2.msra.mxu0 0.0
    %297 = vmatprep.subr.mxu0 0.0
    %298 = vmatpush2.msra.mxu0 0.0
    %299 = vmatprep.subr.mxu0 0.0
    %300 = vmatpush2.msra.mxu0 0.0
    %301 = vmatprep.subr.mxu0 0.0
    %302 = vmatpush2.msra.mxu0 0.0
    %303 = vmatprep.subr.mxu0 0.0
    %304 = vmatpush2.msra.mxu0 0.0
    %305 = vmatprep.subr.mxu0 0.0
    %306 = vmatpush2.msra.mxu0 0.0
    %307 = vmatprep.subr.mxu0 0.0
    %308 = vmatpush2.msra.mxu0 0.0
    %309 = vmatprep.mubr.f32.mxu0 0.0
    %310 = vmatmul.mubr.f32.gmra.mxu0 %v243
    %v311 = vpop.f32.mrf.mxu0
    %v312 = vadd.f32 %v240, %v311
    %v313 = vpop.f32.mrf.mxu0
    %314 = vdwg.mxu0
    %v315 = vld [vmem:[#allocation11] sm:$0xff]
    %v316 = vld [vmem:[#allocation11 + $0x8] sm:$0xff]
    %v317 = vld [vmem:[#allocation11 + $0x10] sm:$0xff]
    %v318 = vld [vmem:[#allocation11 + $0x18] sm:$0xff]
    %v319 = vld [vmem:[%s6] sm:$0xff]
    %v320 = vld [vmem:[%s6 + $0x8] sm:$0xff]
    %v321 = vld [vmem:[%s6 + $0x10] sm:$0xff]
    %v322 = vld [vmem:[%s6 + $0x18] sm:$0xff]
    %v323 = vld [vmem:[%s6 + $0x20] sm:$0xff]
    %v324 = vld [vmem:[%s6 + $0x28] sm:$0xff]
    %v325 = vld [vmem:[%s6 + $0x30] sm:$0xff]
    %v326 = vld [vmem:[%s6 + $0x38] sm:$0xff]
    %v327 = vld [vmem:[#allocation14] sm:$0x1]
    %v329 = vsel %vm229, 0.0, 0
    %331 = vmatprep.subr.mxu0 0.0
    %332 = vmatpush1.msra.mxu0 0.0
    %333 = vmatprep.subr.mxu0 0.0
    %334 = vmatpush1.msra.mxu0 0.0
    %335 = vmatprep.subr.mxu0 0.0
    %336 = vmatpush1.msra.mxu0 0.0
    %337 = vmatprep.subr.mxu0 0.0
    %338 = vmatpush1.msra.mxu0 0.0
    %339 = vmatprep.subr.mxu0 0.0
    %340 = vmatpush1.msra.mxu0 0.0
    %341 = vmatprep.subr.mxu0 0.0
    %342 = vmatpush1.msra.mxu0 0.0
    %343 = vmatprep.subr.mxu0 0.0
    %344 = vmatpush1.msra.mxu0 0.0
    %345 = vmatprep.subr.mxu0 0.0
    %346 = vmatpush1.msra.mxu0 0.0
    %347 = vmatprep.subr.mxu0 0.0
    %348 = vmatpush1.msra.mxu0 0.0
    %349 = vmatprep.subr.mxu0 0.0
    %350 = vmatpush1.msra.mxu0 0.0
    %351 = vmatprep.subr.mxu0 0.0
    %352 = vmatpush1.msra.mxu0 0.0
    %353 = vmatprep.subr.mxu0 0.0
    %354 = vmatpush1.msra.mxu0 0.0
    %355 = vmatprep.subr.mxu0 0.0
    %356 = vmatpush1.msra.mxu0 %v318
    %357 = vmatprep.subr.mxu0 0.0
    %358 = vmatpush1.msra.mxu0 %v317
    %359 = vmatprep.subr.mxu0 0.0
    %360 = vmatpush1.msra.mxu0 %v316
    %361 = vmatprep.subr.mxu0 0.0
    %362 = vmatpush1.msra.mxu0 %v315
    %363 = vmatprep.subr.mxu0 0.0
    %364 = vmatpush2.msra.mxu0 0.0
    %365 = vmatprep.subr.mxu0 0.0
    %366 = vmatpush2.msra.mxu0 0.0
    %367 = vmatprep.subr.mxu0 0.0
    %368 = vmatpush2.msra.mxu0 0.0
    %369 = vmatprep.subr.mxu0 0.0
    %370 = vmatpush2.msra.mxu0 0.0
    %371 = vmatprep.subr.mxu0 0.0
    %372 = vmatpush2.msra.mxu0 0.0
    %373 = vmatprep.subr.mxu0 0.0
    %374 = vmatpush2.msra.mxu0 0.0
    %375 = vmatprep.subr.mxu0 0.0
    %376 = vmatpush2.msra.mxu0 0.0
    %377 = vmatprep.subr.mxu0 0.0
    %378 = vmatpush2.msra.mxu0 0.0
    %379 = vmatprep.subr.mxu0 0.0
    %380 = vmatpush2.msra.mxu0 0.0
    %381 = vmatprep.subr.mxu0 0.0
    %382 = vmatpush2.msra.mxu0 0.0
    %383 = vmatprep.subr.mxu0 0.0
    %384 = vmatpush2.msra.mxu0 0.0
    %385 = vmatprep.subr.mxu0 0.0
    %386 = vmatpush2.msra.mxu0 0.0
    %387 = vmatprep.subr.mxu0 0.0
    %388 = vmatpush2.msra.mxu0 0.0
    %389 = vmatprep.subr.mxu0 0.0
    %390 = vmatpush2.msra.mxu0 0.0
    %391 = vmatprep.subr.mxu0 0.0
    %392 = vmatpush2.msra.mxu0 0.0
    %393 = vmatprep.subr.mxu0 0.0
    %394 = vmatpush2.msra.mxu0 0.0
    %395 = vmatprep.mubr.f32.mxu0 0.0
    %396 = vmatmul.mubr.f32.gmra.mxu0 %v329
    %v397 = vpop.f32.mrf.mxu0
    %v398 = vadd.f32 0.0, %v397
    %v399 = vpop.f32.mrf.mxu0
    %400 = vdwg.mxu0
    %v401 = vadd.f32 %v312, %v398
    %v402 = vxor.u32 %v401, 2147483648
    %v403 = vmul.f32 %v402, 1.442695
    %v404 = vpow.pop %v403
    %v405 = vadd.f32 %v404, 1.0
    %v406 = vrcp.pop %v405
    %v407 = vmul.f32 1.0, %v406
    %v408 = vtanh.pop %v401
    %v409 = vmul.f32 %v407, 0.0
    %411 = vrot.lane.b32.xlu0 %v408, 64
    %v412 = vpop.permute.xlu0 %411
    %v414 = vmul.f32 %v407, %v412
    %416 = vrot.lane.b32.xlu0 %v414, 32
    %v417 = vpop.permute.xlu0 %416
    %v419 = vadd.f32 %v409, %v417
    %v420 = vtanh.pop %v419
    %422 = vrot.lane.b32.xlu0 %v420, 64
    %v423 = vpop.permute.xlu0 %422
    %v425 = vmul.f32 %v407, %v423
    %427 = vrot.lane.b32.xlu0 %v425, 32
    %v428 = vpop.permute.xlu0 %427
    %v430 = vsel %vm229, %v428, 0.0
    %v432 = vlaneseq
    %v433 = vshrl.u32 %v432, 7
    %v434 = vsub.s32 0, %v433
    %v435 = vrot.slane %v327, %v434
    %vm437 = vcmask 523264
    %v439 = vsel %vm437, %v430, 0
    %441 = vmatprep.subr.mxu0 0.0
    %442 = vmatpush1.msra.mxu0 0.0
    %443 = vmatprep.subr.mxu0 0.0
    %444 = vmatpush1.msra.mxu0 0.0
    %445 = vmatprep.subr.mxu0 0.0
    %446 = vmatpush1.msra.mxu0 0.0
    %447 = vmatprep.subr.mxu0 0.0
    %448 = vmatpush1.msra.mxu0 0.0
    %449 = vmatprep.subr.mxu0 0.0
    %450 = vmatpush1.msra.mxu0 0.0
    %451 = vmatprep.subr.mxu0 0.0
    %452 = vmatpush1.msra.mxu0 0.0
    %453 = vmatprep.subr.mxu0 0.0
    %454 = vmatpush1.msra.mxu0 0.0
    %455 = vmatprep.subr.mxu0 0.0
    %456 = vmatpush1.msra.mxu0 0.0
    %457 = vmatprep.subr.mxu0 0.0
    %458 = vmatpush1.msra.mxu0 %v326
    %459 = vmatprep.subr.mxu0 0.0
    %460 = vmatpush1.msra.mxu0 %v325
    %461 = vmatprep.subr.mxu0 0.0
    %462 = vmatpush1.msra.mxu0 %v324
    %463 = vmatprep.subr.mxu0 0.0
    %464 = vmatpush1.msra.mxu0 %v323
    %465 = vmatprep.subr.mxu0 0.0
    %466 = vmatpush1.msra.mxu0 %v322
    %467 = vmatprep.subr.mxu0 0.0
    %468 = vmatpush1.msra.mxu0 %v321
    %469 = vmatprep.subr.mxu0 0.0
    %470 = vmatpush1.msra.mxu0 %v320
    %471 = vmatprep.subr.mxu0 0.0
    %472 = vmatpush1.msra.mxu0 %v319
    %473 = vmatprep.subr.mxu0 0.0
    %474 = vmatpush2.msra.mxu0 0.0
    %475 = vmatprep.subr.mxu0 0.0
    %476 = vmatpush2.msra.mxu0 0.0
    %477 = vmatprep.subr.mxu0 0.0
    %478 = vmatpush2.msra.mxu0 0.0
    %479 = vmatprep.subr.mxu0 0.0
    %480 = vmatpush2.msra.mxu0 0.0
    %481 = vmatprep.subr.mxu0 0.0
    %482 = vmatpush2.msra.mxu0 0.0
    %483 = vmatprep.subr.mxu0 0.0
    %484 = vmatpush2.msra.mxu0 0.0
    %485 = vmatprep.subr.mxu0 0.0
    %486 = vmatpush2.msra.mxu0 0.0
    %487 = vmatprep.subr.mxu0 0.0
    %488 = vmatpush2.msra.mxu0 0.0
    %489 = vmatprep.subr.mxu0 0.0
    %490 = vmatpush2.msra.mxu0 0.0
    %491 = vmatprep.subr.mxu0 0.0
    %492 = vmatpush2.msra.mxu0 0.0
    %493 = vmatprep.subr.mxu0 0.0
    %494 = vmatpush2.msra.mxu0 0.0
    %495 = vmatprep.subr.mxu0 0.0
    %496 = vmatpush2.msra.mxu0 0.0
    %497 = vmatprep.subr.mxu0 0.0
    %498 = vmatpush2.msra.mxu0 0.0
    %499 = vmatprep.subr.mxu0 0.0
    %500 = vmatpush2.msra.mxu0 0.0
    %501 = vmatprep.subr.mxu0 0.0
    %502 = vmatpush2.msra.mxu0 0.0
    %503 = vmatprep.subr.mxu0 0.0
    %504 = vmatpush2.msra.mxu0 0.0
    %505 = vmatprep.mubr.f32.mxu0 0.0
    %506 = vmatmul.mubr.f32.gmra.mxu0 %v439
    %v507 = vpop.f32.mrf.mxu0
    %v508 = vadd.f32 %v435, %v507
    %v509 = vpop.f32.mrf.mxu0
    %510 = vdwg.mxu0
    %v511 = vxor.u32 %v508, 2147483648
    %v512 = vmul.f32 %v511, 1.442695
    %v513 = vpow.pop %v512
    %v514 = vadd.f32 %v513, 1.0
    %v515 = vrcp.pop %v514
    %v516 = vmul.f32 1.0, %v515
    %v517 = vtanh.pop %v508
    %v518 = vmul.f32 %v516, 0.0
    %520 = vrot.lane.b32.xlu0 %v517, 64
    %v521 = vpop.permute.xlu0 %520
    %v523 = vmul.f32 %v516, %v521
    %525 = vrot.lane.b32.xlu0 %v523, 32
    %v526 = vpop.permute.xlu0 %525
    %v528 = vadd.f32 %v518, %v526
    %v529 = vtanh.pop %v528
    %531 = vrot.lane.b32.xlu0 %v529, 64
    %v532 = vpop.permute.xlu0 %531
    %v534 = vmul.f32 %v516, %v532
    %536 = vrot.lane.b32.xlu0 %v534, 32
    %v537 = vpop.permute.xlu0 %536
    %539 = vst.msk [vmem:[#allocation2] sm:$0xff] %vm229, %v537
    %v540 = vsel %vm229, %v428, 0
    %542 = vmatprep.subr.mxu0 0.0
    %543 = vmatpush1.msra.mxu0 0.0
    %544 = vmatprep.subr.mxu0 0.0
    %545 = vmatpush1.msra.mxu0 0.0
    %546 = vmatprep.subr.mxu0 0.0
    %547 = vmatpush1.msra.mxu0 0.0
    %548 = vmatprep.subr.mxu0 0.0
    %549 = vmatpush1.msra.mxu0 0.0
    %550 = vmatprep.subr.mxu0 0.0
    %551 = vmatpush1.msra.mxu0 0.0
    %552 = vmatprep.subr.mxu0 0.0
    %553 = vmatpush1.msra.mxu0 0.0
    %554 = vmatprep.subr.mxu0 0.0
    %555 = vmatpush1.msra.mxu0 0.0
    %556 = vmatprep.subr.mxu0 0.0
    %557 = vmatpush1.msra.mxu0 0.0
    %558 = vmatprep.subr.mxu0 0.0
    %559 = vmatpush1.msra.mxu0 0.0
    %560 = vmatprep.subr.mxu0 0.0
    %561 = vmatpush1.msra.mxu0 0.0
    %562 = vmatprep.subr.mxu0 0.0
    %563 = vmatpush1.msra.mxu0 0.0
    %564 = vmatprep.subr.mxu0 0.0
    %565 = vmatpush1.msra.mxu0 0.0
    %566 = vmatprep.subr.mxu0 0.0
    %567 = vmatpush1.msra.mxu0 %v318
    %568 = vmatprep.subr.mxu0 0.0
    %569 = vmatpush1.msra.mxu0 %v317
    %570 = vmatprep.subr.mxu0 0.0
    %571 = vmatpush1.msra.mxu0 %v316
    %572 = vmatprep.subr.mxu0 0.0
    %573 = vmatpush1.msra.mxu0 %v315
    %574 = vmatprep.subr.mxu0 0.0
    %575 = vmatpush2.msra.mxu0 0.0
    %576 = vmatprep.subr.mxu0 0.0
    %577 = vmatpush2.msra.mxu0 0.0
    %578 = vmatprep.subr.mxu0 0.0
    %579 = vmatpush2.msra.mxu0 0.0
    %580 = vmatprep.subr.mxu0 0.0
    %581 = vmatpush2.msra.mxu0 0.0
    %582 = vmatprep.subr.mxu0 0.0
    %583 = vmatpush2.msra.mxu0 0.0
    %584 = vmatprep.subr.mxu0 0.0
    %585 = vmatpush2.msra.mxu0 0.0
    %586 = vmatprep.subr.mxu0 0.0
    %587 = vmatpush2.msra.mxu0 0.0
    %588 = vmatprep.subr.mxu0 0.0
    %589 = vmatpush2.msra.mxu0 0.0
    %590 = vmatprep.subr.mxu0 0.0
    %591 = vmatpush2.msra.mxu0 0.0
    %592 = vmatprep.subr.mxu0 0.0
    %593 = vmatpush2.msra.mxu0 0.0
    %594 = vmatprep.subr.mxu0 0.0
    %595 = vmatpush2.msra.mxu0 0.0
    %596 = vmatprep.subr.mxu0 0.0
    %597 = vmatpush2.msra.mxu0 0.0
    %598 = vmatprep.subr.mxu0 0.0
    %599 = vmatpush2.msra.mxu0 0.0
    %600 = vmatprep.subr.mxu0 0.0
    %601 = vmatpush2.msra.mxu0 0.0
    %602 = vmatprep.subr.mxu0 0.0
    %603 = vmatpush2.msra.mxu0 0.0
    %604 = vmatprep.subr.mxu0 0.0
    %605 = vmatpush2.msra.mxu0 0.0
    %606 = vmatprep.mubr.f32.mxu0 0.0
    %607 = vmatmul.mubr.f32.gmra.mxu0 %v540
    %v608 = vpop.f32.mrf.mxu0
    %v609 = vadd.f32 0.0, %v608
    %v610 = vpop.f32.mrf.mxu0
    %611 = vdwg.mxu0
    %v612 = vadd.f32 %v312, %v609
    %v613 = vxor.u32 %v612, 2147483648
    %v614 = vmul.f32 %v613, 1.442695
    %v615 = vpow.pop %v614
    %v616 = vadd.f32 %v615, 1.0
    %v617 = vrcp.pop %v616
    %v618 = vmul.f32 1.0, %v617
    %v619 = vtanh.pop %v612
    %v620 = vmul.f32 %v618, %v419
    %622 = vrot.lane.b32.xlu0 %v619, 64
    %v623 = vpop.permute.xlu0 %622
    %v625 = vmul.f32 %v618, %v623
    %627 = vrot.lane.b32.xlu0 %v625, 32
    %v628 = vpop.permute.xlu0 %627
    %v630 = vadd.f32 %v620, %v628
    %v631 = vtanh.pop %v630
    %633 = vrot.lane.b32.xlu0 %v631, 64
    %v634 = vpop.permute.xlu0 %633
    %v636 = vmul.f32 %v618, %v634
    %638 = vrot.lane.b32.xlu0 %v636, 32
    %v639 = vpop.permute.xlu0 %638
    %641 = vrot.lane.b32.xlu0 %v534, 64
    %v642 = vpop.permute.xlu0 %641
    %v644 = vsel %vm229, %v639, %v642
    %v646 = vsel %vm437, %v644, 0
    %648 = vmatprep.subr.mxu0 0.0
    %649 = vmatpush1.msra.mxu0 0.0
    %650 = vmatprep.subr.mxu0 0.0
    %651 = vmatpush1.msra.mxu0 0.0
    %652 = vmatprep.subr.mxu0 0.0
    %653 = vmatpush1.msra.mxu0 0.0
    %654 = vmatprep.subr.mxu0 0.0
    %655 = vmatpush1.msra.mxu0 0.0
    %656 = vmatprep.subr.mxu0 0.0
    %657 = vmatpush1.msra.mxu0 0.0
    %658 = vmatprep.subr.mxu0 0.0
    %659 = vmatpush1.msra.mxu0 0.0
    %660 = vmatprep.subr.mxu0 0.0
    %661 = vmatpush1.msra.mxu0 0.0
    %662 = vmatprep.subr.mxu0 0.0
    %663 = vmatpush1.msra.mxu0 0.0
    %664 = vmatprep.subr.mxu0 0.0
    %665 = vmatpush1.msra.mxu0 %v326
    %666 = vmatprep.subr.mxu0 0.0
    %667 = vmatpush1.msra.mxu0 %v325
    %668 = vmatprep.subr.mxu0 0.0
    %669 = vmatpush1.msra.mxu0 %v324
    %670 = vmatprep.subr.mxu0 0.0
    %671 = vmatpush1.msra.mxu0 %v323
    %672 = vmatprep.subr.mxu0 0.0
    %673 = vmatpush1.msra.mxu0 %v322
    %674 = vmatprep.subr.mxu0 0.0
    %675 = vmatpush1.msra.mxu0 %v321
    %676 = vmatprep.subr.mxu0 0.0
    %677 = vmatpush1.msra.mxu0 %v320
    %678 = vmatprep.subr.mxu0 0.0
    %679 = vmatpush1.msra.mxu0 %v319
    %680 = vmatprep.subr.mxu0 0.0
    %681 = vmatpush2.msra.mxu0 0.0
    %682 = vmatprep.subr.mxu0 0.0
    %683 = vmatpush2.msra.mxu0 0.0
    %684 = vmatprep.subr.mxu0 0.0
    %685 = vmatpush2.msra.mxu0 0.0
    %686 = vmatprep.subr.mxu0 0.0
    %687 = vmatpush2.msra.mxu0 0.0
    %688 = vmatprep.subr.mxu0 0.0
    %689 = vmatpush2.msra.mxu0 0.0
    %690 = vmatprep.subr.mxu0 0.0
    %691 = vmatpush2.msra.mxu0 0.0
    %692 = vmatprep.subr.mxu0 0.0
    %693 = vmatpush2.msra.mxu0 0.0
    %694 = vmatprep.subr.mxu0 0.0
    %695 = vmatpush2.msra.mxu0 0.0
    %696 = vmatprep.subr.mxu0 0.0
    %697 = vmatpush2.msra.mxu0 0.0
    %698 = vmatprep.subr.mxu0 0.0
    %699 = vmatpush2.msra.mxu0 0.0
    %700 = vmatprep.subr.mxu0 0.0
    %701 = vmatpush2.msra.mxu0 0.0
    %702 = vmatprep.subr.mxu0 0.0
    %703 = vmatpush2.msra.mxu0 0.0
    %704 = vmatprep.subr.mxu0 0.0
    %705 = vmatpush2.msra.mxu0 0.0
    %706 = vmatprep.subr.mxu0 0.0
    %707 = vmatpush2.msra.mxu0 0.0
    %708 = vmatprep.subr.mxu0 0.0
    %709 = vmatpush2.msra.mxu0 0.0
    %710 = vmatprep.subr.mxu0 0.0
    %711 = vmatpush2.msra.mxu0 0.0
    %712 = vmatprep.mubr.f32.mxu0 0.0
    %713 = vmatmul.mubr.f32.gmra.mxu0 %v646
    %v714 = vpop.f32.mrf.mxu0
    %v715 = vadd.f32 %v435, %v714
    %v716 = vpop.f32.mrf.mxu0
    %717 = vdwg.mxu0
    %v718 = vxor.u32 %v715, 2147483648
    %v719 = vmul.f32 %v718, 1.442695
    %v720 = vpow.pop %v719
    %v721 = vadd.f32 %v720, 1.0
    %v722 = vrcp.pop %v721
    %v723 = vmul.f32 1.0, %v722
    %v724 = vtanh.pop %v715
    %v725 = vmul.f32 %v723, %v528
    %727 = vrot.lane.b32.xlu0 %v724, 64
    %v728 = vpop.permute.xlu0 %727
    %v730 = vmul.f32 %v723, %v728
    %732 = vrot.lane.b32.xlu0 %v730, 32
    %v733 = vpop.permute.xlu0 %732
    %v735 = vadd.f32 %v725, %v733
    %v736 = vtanh.pop %v735
    %738 = vrot.lane.b32.xlu0 %v736, 64
    %v739 = vpop.permute.xlu0 %738
    %v741 = vmul.f32 %v723, %v739
    %743 = vrot.lane.b32.xlu0 %v741, 32
    %v744 = vpop.permute.xlu0 %743
    %s746 = scalar_lea.vmem [#allocation2], 8
    %747 = vst.msk [vmem:[%s746] sm:$0xff] %vm229, %v744
    %v748 = vsel %vm229, %v639, 0
    %750 = vmatprep.subr.mxu0 0.0
    %751 = vmatpush1.msra.mxu0 0.0
    %752 = vmatprep.subr.mxu0 0.0
    %753 = vmatpush1.msra.mxu0 0.0
    %754 = vmatprep.subr.mxu0 0.0
    %755 = vmatpush1.msra.mxu0 0.0
    %756 = vmatprep.subr.mxu0 0.0
    %757 = vmatpush1.msra.mxu0 0.0
    %758 = vmatprep.subr.mxu0 0.0
    %759 = vmatpush1.msra.mxu0 0.0
    %760 = vmatprep.subr.mxu0 0.0
    %761 = vmatpush1.msra.mxu0 0.0
    %762 = vmatprep.subr.mxu0 0.0
    %763 = vmatpush1.msra.mxu0 0.0
    %764 = vmatprep.subr.mxu0 0.0
    %765 = vmatpush1.msra.mxu0 0.0
    %766 = vmatprep.subr.mxu0 0.0
    %767 = vmatpush1.msra.mxu0 0.0
    %768 = vmatprep.subr.mxu0 0.0
    %769 = vmatpush1.msra.mxu0 0.0
    %770 = vmatprep.subr.mxu0 0.0
    %771 = vmatpush1.msra.mxu0 0.0
    %772 = vmatprep.subr.mxu0 0.0
    %773 = vmatpush1.msra.mxu0 0.0
    %774 = vmatprep.subr.mxu0 0.0
    %775 = vmatpush1.msra.mxu0 %v318
    %776 = vmatprep.subr.mxu0 0.0
    %777 = vmatpush1.msra.mxu0 %v317
    %778 = vmatprep.subr.mxu0 0.0
    %779 = vmatpush1.msra.mxu0 %v316
    %780 = vmatprep.subr.mxu0 0.0
    %781 = vmatpush1.msra.mxu0 %v315
    %782 = vmatprep.subr.mxu0 0.0
    %783 = vmatpush2.msra.mxu0 0.0
    %784 = vmatprep.subr.mxu0 0.0
    %785 = vmatpush2.msra.mxu0 0.0
    %786 = vmatprep.subr.mxu0 0.0
    %787 = vmatpush2.msra.mxu0 0.0
    %788 = vmatprep.subr.mxu0 0.0
    %789 = vmatpush2.msra.mxu0 0.0
    %790 = vmatprep.subr.mxu0 0.0
    %791 = vmatpush2.msra.mxu0 0.0
    %792 = vmatprep.subr.mxu0 0.0
    %793 = vmatpush2.msra.mxu0 0.0
    %794 = vmatprep.subr.mxu0 0.0
    %795 = vmatpush2.msra.mxu0 0.0
    %796 = vmatprep.subr.mxu0 0.0
    %797 = vmatpush2.msra.mxu0 0.0
    %798 = vmatprep.subr.mxu0 0.0
    %799 = vmatpush2.msra.mxu0 0.0
    %800 = vmatprep.subr.mxu0 0.0
    %801 = vmatpush2.msra.mxu0 0.0
    %802 = vmatprep.subr.mxu0 0.0
    %803 = vmatpush2.msra.mxu0 0.0
    %804 = vmatprep.subr.mxu0 0.0
    %805 = vmatpush2.msra.mxu0 0.0
    %806 = vmatprep.subr.mxu0 0.0
    %807 = vmatpush2.msra.mxu0 0.0
    %808 = vmatprep.subr.mxu0 0.0
    %809 = vmatpush2.msra.mxu0 0.0
    %810 = vmatprep.subr.mxu0 0.0
    %811 = vmatpush2.msra.mxu0 0.0
    %812 = vmatprep.subr.mxu0 0.0
    %813 = vmatpush2.msra.mxu0 0.0
    %814 = vmatprep.mubr.f32.mxu0 0.0
    %815 = vmatmul.mubr.f32.gmra.mxu0 %v748
    %v816 = vpop.f32.mrf.mxu0
    %v817 = vadd.f32 0.0, %v816
    %v818 = vpop.f32.mrf.mxu0
    %819 = vdwg.mxu0
    %v820 = vadd.f32 %v312, %v817
    %v821 = vxor.u32 %v820, 2147483648
    %v822 = vmul.f32 %v821, 1.442695
    %v823 = vpow.pop %v822
    %v824 = vadd.f32 %v823, 1.0
    %v825 = vrcp.pop %v824
    %v826 = vmul.f32 1.0, %v825
    %v827 = vtanh.pop %v820
    %v828 = vmul.f32 %v826, %v630
    %830 = vrot.lane.b32.xlu0 %v827, 64
    %v831 = vpop.permute.xlu0 %830
    %v833 = vmul.f32 %v826, %v831
    %835 = vrot.lane.b32.xlu0 %v833, 32
    %v836 = vpop.permute.xlu0 %835
    %v838 = vadd.f32 %v828, %v836
    %v839 = vtanh.pop %v838
    %841 = vrot.lane.b32.xlu0 %v839, 64
    %v842 = vpop.permute.xlu0 %841
    %v844 = vmul.f32 %v826, %v842
    %846 = vrot.lane.b32.xlu0 %v844, 32
    %v847 = vpop.permute.xlu0 %846
    %849 = vrot.lane.b32.xlu0 %v741, 64
    %v850 = vpop.permute.xlu0 %849
    %v852 = vsel %vm229, %v847, %v850
    %v854 = vsel %vm437, %v852, 0
    %856 = vmatprep.subr.mxu0 0.0
    %857 = vmatpush1.msra.mxu0 0.0
    %858 = vmatprep.subr.mxu0 0.0
    %859 = vmatpush1.msra.mxu0 0.0
    %860 = vmatprep.subr.mxu0 0.0
    %861 = vmatpush1.msra.mxu0 0.0
    %862 = vmatprep.subr.mxu0 0.0
    %863 = vmatpush1.msra.mxu0 0.0
    %864 = vmatprep.subr.mxu0 0.0
    %865 = vmatpush1.msra.mxu0 0.0
    %866 = vmatprep.subr.mxu0 0.0
    %867 = vmatpush1.msra.mxu0 0.0
    %868 = vmatprep.subr.mxu0 0.0
    %869 = vmatpush1.msra.mxu0 0.0
    %870 = vmatprep.subr.mxu0 0.0
    %871 = vmatpush1.msra.mxu0 0.0
    %872 = vmatprep.subr.mxu0 0.0
    %873 = vmatpush1.msra.mxu0 %v326
    %874 = vmatprep.subr.mxu0 0.0
    %875 = vmatpush1.msra.mxu0 %v325
    %876 = vmatprep.subr.mxu0 0.0
    %877 = vmatpush1.msra.mxu0 %v324
    %878 = vmatprep.subr.mxu0 0.0
    %879 = vmatpush1.msra.mxu0 %v323
    %880 = vmatprep.subr.mxu0 0.0
    %881 = vmatpush1.msra.mxu0 %v322
    %882 = vmatprep.subr.mxu0 0.0
    %883 = vmatpush1.msra.mxu0 %v321
    %884 = vmatprep.subr.mxu0 0.0
    %885 = vmatpush1.msra.mxu0 %v320
    %886 = vmatprep.subr.mxu0 0.0
    %887 = vmatpush1.msra.mxu0 %v319
    %888 = vmatprep.subr.mxu0 0.0
    %889 = vmatpush2.msra.mxu0 0.0
    %890 = vmatprep.subr.mxu0 0.0
    %891 = vmatpush2.msra.mxu0 0.0
    %892 = vmatprep.subr.mxu0 0.0
    %893 = vmatpush2.msra.mxu0 0.0
    %894 = vmatprep.subr.mxu0 0.0
    %895 = vmatpush2.msra.mxu0 0.0
    %896 = vmatprep.subr.mxu0 0.0
    %897 = vmatpush2.msra.mxu0 0.0
    %898 = vmatprep.subr.mxu0 0.0
    %899 = vmatpush2.msra.mxu0 0.0
    %900 = vmatprep.subr.mxu0 0.0
    %901 = vmatpush2.msra.mxu0 0.0
    %902 = vmatprep.subr.mxu0 0.0
    %903 = vmatpush2.msra.mxu0 0.0
    %904 = vmatprep.subr.mxu0 0.0
    %905 = vmatpush2.msra.mxu0 0.0
    %906 = vmatprep.subr.mxu0 0.0
    %907 = vmatpush2.msra.mxu0 0.0
    %908 = vmatprep.subr.mxu0 0.0
    %909 = vmatpush2.msra.mxu0 0.0
    %910 = vmatprep.subr.mxu0 0.0
    %911 = vmatpush2.msra.mxu0 0.0
    %912 = vmatprep.subr.mxu0 0.0
    %913 = vmatpush2.msra.mxu0 0.0
    %914 = vmatprep.subr.mxu0 0.0
    %915 = vmatpush2.msra.mxu0 0.0
    %916 = vmatprep.subr.mxu0 0.0
    %917 = vmatpush2.msra.mxu0 0.0
    %918 = vmatprep.subr.mxu0 0.0
    %919 = vmatpush2.msra.mxu0 0.0
    %920 = vmatprep.mubr.f32.mxu0 0.0
    %921 = vmatmul.mubr.f32.gmra.mxu0 %v854
    %v922 = vpop.f32.mrf.mxu0
    %v923 = vadd.f32 %v435, %v922
    %v924 = vpop.f32.mrf.mxu0
    %925 = vdwg.mxu0
    %v926 = vxor.u32 %v923, 2147483648
    %v927 = vmul.f32 %v926, 1.442695
    %v928 = vpow.pop %v927
    %v929 = vadd.f32 %v928, 1.0
    %v930 = vrcp.pop %v929
    %v931 = vmul.f32 1.0, %v930
    %v932 = vtanh.pop %v923
    %v933 = vmul.f32 %v931, %v735
    %935 = vrot.lane.b32.xlu0 %v932, 64
    %v936 = vpop.permute.xlu0 %935
    %v938 = vmul.f32 %v931, %v936
    %940 = vrot.lane.b32.xlu0 %v938, 32
    %v941 = vpop.permute.xlu0 %940
    %v943 = vadd.f32 %v933, %v941
    %v944 = vtanh.pop %v943
    %946 = vrot.lane.b32.xlu0 %v944, 64
    %v947 = vpop.permute.xlu0 %946
    %v949 = vmul.f32 %v931, %v947
    %951 = vrot.lane.b32.xlu0 %v949, 32
    %v952 = vpop.permute.xlu0 %951
    %s954 = scalar_lea.vmem [#allocation2], 16
    %955 = vst.msk [vmem:[%s954] sm:$0xff] %vm229, %v952
    %v956 = vsel %vm229, %v847, 0
    %958 = vmatprep.subr.mxu0 0.0
    %959 = vmatpush1.msra.mxu0 0.0
    %960 = vmatprep.subr.mxu0 0.0
    %961 = vmatpush1.msra.mxu0 0.0
    %962 = vmatprep.subr.mxu0 0.0
    %963 = vmatpush1.msra.mxu0 0.0
    %964 = vmatprep.subr.mxu0 0.0
    %965 = vmatpush1.msra.mxu0 0.0
    %966 = vmatprep.subr.mxu0 0.0
    %967 = vmatpush1.msra.mxu0 0.0
    %968 = vmatprep.subr.mxu0 0.0
    %969 = vmatpush1.msra.mxu0 0.0
    %970 = vmatprep.subr.mxu0 0.0
    %971 = vmatpush1.msra.mxu0 0.0
    %972 = vmatprep.subr.mxu0 0.0
    %973 = vmatpush1.msra.mxu0 0.0
    %974 = vmatprep.subr.mxu0 0.0
    %975 = vmatpush1.msra.mxu0 0.0
    %976 = vmatprep.subr.mxu0 0.0
    %977 = vmatpush1.msra.mxu0 0.0
    %978 = vmatprep.subr.mxu0 0.0
    %979 = vmatpush1.msra.mxu0 0.0
    %980 = vmatprep.subr.mxu0 0.0
    %981 = vmatpush1.msra.mxu0 0.0
    %982 = vmatprep.subr.mxu0 0.0
    %983 = vmatpush1.msra.mxu0 %v318
    %984 = vmatprep.subr.mxu0 0.0
    %985 = vmatpush1.msra.mxu0 %v317
    %986 = vmatprep.subr.mxu0 0.0
    %987 = vmatpush1.msra.mxu0 %v316
    %988 = vmatprep.subr.mxu0 0.0
    %989 = vmatpush1.msra.mxu0 %v315
    %990 = vmatprep.subr.mxu0 0.0
    %991 = vmatpush2.msra.mxu0 0.0
    %992 = vmatprep.subr.mxu0 0.0
    %993 = vmatpush2.msra.mxu0 0.0
    %994 = vmatprep.subr.mxu0 0.0
    %995 = vmatpush2.msra.mxu0 0.0
    %996 = vmatprep.subr.mxu0 0.0
    %997 = vmatpush2.msra.mxu0 0.0
    %998 = vmatprep.subr.mxu0 0.0
    %999 = vmatpush2.msra.mxu0 0.0
    %1000 = vmatprep.subr.mxu0 0.0
    %1001 = vmatpush2.msra.mxu0 0.0
    %1002 = vmatprep.subr.mxu0 0.0
    %1003 = vmatpush2.msra.mxu0 0.0
    %1004 = vmatprep.subr.mxu0 0.0
    %1005 = vmatpush2.msra.mxu0 0.0
    %1006 = vmatprep.subr.mxu0 0.0
    %1007 = vmatpush2.msra.mxu0 0.0
    %1008 = vmatprep.subr.mxu0 0.0
    %1009 = vmatpush2.msra.mxu0 0.0
    %1010 = vmatprep.subr.mxu0 0.0
    %1011 = vmatpush2.msra.mxu0 0.0
    %1012 = vmatprep.subr.mxu0 0.0
    %1013 = vmatpush2.msra.mxu0 0.0
    %1014 = vmatprep.subr.mxu0 0.0
    %1015 = vmatpush2.msra.mxu0 0.0
    %1016 = vmatprep.subr.mxu0 0.0
    %1017 = vmatpush2.msra.mxu0 0.0
    %1018 = vmatprep.subr.mxu0 0.0
    %1019 = vmatpush2.msra.mxu0 0.0
    %1020 = vmatprep.subr.mxu0 0.0
    %1021 = vmatpush2.msra.mxu0 0.0
    %1022 = vmatprep.mubr.f32.mxu0 0.0
    %1023 = vmatmul.mubr.f32.gmra.mxu0 %v956
    %v1024 = vpop.f32.mrf.mxu0
    %v1025 = vadd.f32 0.0, %v1024
    %v1026 = vpop.f32.mrf.mxu0
    %1027 = vdwg.mxu0
    %v1028 = vadd.f32 %v312, %v1025
    %v1029 = vxor.u32 %v1028, 2147483648
    %v1030 = vmul.f32 %v1029, 1.442695
    %v1031 = vpow.pop %v1030
    %v1032 = vadd.f32 %v1031, 1.0
    %v1033 = vrcp.pop %v1032
    %v1034 = vmul.f32 1.0, %v1033
    %v1035 = vtanh.pop %v1028
    %v1036 = vmul.f32 %v1034, %v838
    %1038 = vrot.lane.b32.xlu0 %v1035, 64
    %v1039 = vpop.permute.xlu0 %1038
    %v1041 = vmul.f32 %v1034, %v1039
    %1043 = vrot.lane.b32.xlu0 %v1041, 32
    %v1044 = vpop.permute.xlu0 %1043
    %v1046 = vadd.f32 %v1036, %v1044
    %v1047 = vtanh.pop %v1046
    %1049 = vrot.lane.b32.xlu0 %v1047, 64
    %v1050 = vpop.permute.xlu0 %1049
    %v1052 = vmul.f32 %v1034, %v1050
    %1054 = vrot.lane.b32.xlu0 %v1052, 32
    %v1055 = vpop.permute.xlu0 %1054
    %1057 = vrot.lane.b32.xlu0 %v949, 64
    %v1058 = vpop.permute.xlu0 %1057
    %v1060 = vsel %vm229, %v1055, %v1058
    %v1062 = vsel %vm437, %v1060, 0
    %1064 = vmatprep.subr.mxu0 0.0
    %1065 = vmatpush1.msra.mxu0 0.0
    %1066 = vmatprep.subr.mxu0 0.0
    %1067 = vmatpush1.msra.mxu0 0.0
    %1068 = vmatprep.subr.mxu0 0.0
    %1069 = vmatpush1.msra.mxu0 0.0
    %1070 = vmatprep.subr.mxu0 0.0
    %1071 = vmatpush1.msra.mxu0 0.0
    %1072 = vmatprep.subr.mxu0 0.0
    %1073 = vmatpush1.msra.mxu0 0.0
    %1074 = vmatprep.subr.mxu0 0.0
    %1075 = vmatpush1.msra.mxu0 0.0
    %1076 = vmatprep.subr.mxu0 0.0
    %1077 = vmatpush1.msra.mxu0 0.0
    %1078 = vmatprep.subr.mxu0 0.0
    %1079 = vmatpush1.msra.mxu0 0.0
    %1080 = vmatprep.subr.mxu0 0.0
    %1081 = vmatpush1.msra.mxu0 %v326
    %1082 = vmatprep.subr.mxu0 0.0
    %1083 = vmatpush1.msra.mxu0 %v325
    %1084 = vmatprep.subr.mxu0 0.0
    %1085 = vmatpush1.msra.mxu0 %v324
    %1086 = vmatprep.subr.mxu0 0.0
    %1087 = vmatpush1.msra.mxu0 %v323
    %1088 = vmatprep.subr.mxu0 0.0
    %1089 = vmatpush1.msra.mxu0 %v322
    %1090 = vmatprep.subr.mxu0 0.0
    %1091 = vmatpush1.msra.mxu0 %v321
    %1092 = vmatprep.subr.mxu0 0.0
    %1093 = vmatpush1.msra.mxu0 %v320
    %1094 = vmatprep.subr.mxu0 0.0
    %1095 = vmatpush1.msra.mxu0 %v319
    %1096 = vmatprep.subr.mxu0 0.0
    %1097 = vmatpush2.msra.mxu0 0.0
    %1098 = vmatprep.subr.mxu0 0.0
    %1099 = vmatpush2.msra.mxu0 0.0
    %1100 = vmatprep.subr.mxu0 0.0
    %1101 = vmatpush2.msra.mxu0 0.0
    %1102 = vmatprep.subr.mxu0 0.0
    %1103 = vmatpush2.msra.mxu0 0.0
    %1104 = vmatprep.subr.mxu0 0.0
    %1105 = vmatpush2.msra.mxu0 0.0
    %1106 = vmatprep.subr.mxu0 0.0
    %1107 = vmatpush2.msra.mxu0 0.0
    %1108 = vmatprep.subr.mxu0 0.0
    %1109 = vmatpush2.msra.mxu0 0.0
    %1110 = vmatprep.subr.mxu0 0.0
    %1111 = vmatpush2.msra.mxu0 0.0
    %1112 = vmatprep.subr.mxu0 0.0
    %1113 = vmatpush2.msra.mxu0 0.0
    %1114 = vmatprep.subr.mxu0 0.0
    %1115 = vmatpush2.msra.mxu0 0.0
    %1116 = vmatprep.subr.mxu0 0.0
    %1117 = vmatpush2.msra.mxu0 0.0
    %1118 = vmatprep.subr.mxu0 0.0
    %1119 = vmatpush2.msra.mxu0 0.0
    %1120 = vmatprep.subr.mxu0 0.0
    %1121 = vmatpush2.msra.mxu0 0.0
    %1122 = vmatprep.subr.mxu0 0.0
    %1123 = vmatpush2.msra.mxu0 0.0
    %1124 = vmatprep.subr.mxu0 0.0
    %1125 = vmatpush2.msra.mxu0 0.0
    %1126 = vmatprep.subr.mxu0 0.0
    %1127 = vmatpush2.msra.mxu0 0.0
    %1128 = vmatprep.mubr.f32.mxu0 0.0
    %1129 = vmatmul.mubr.f32.gmra.mxu0 %v1062
    %v1130 = vpop.f32.mrf.mxu0
    %v1131 = vadd.f32 %v435, %v1130
    %v1132 = vpop.f32.mrf.mxu0
    %1133 = vdwg.mxu0
    %v1134 = vxor.u32 %v1131, 2147483648
    %v1135 = vmul.f32 %v1134, 1.442695
    %v1136 = vpow.pop %v1135
    %v1137 = vadd.f32 %v1136, 1.0
    %v1138 = vrcp.pop %v1137
    %v1139 = vmul.f32 1.0, %v1138
    %v1140 = vtanh.pop %v1131
    %v1141 = vmul.f32 %v1139, %v943
    %1143 = vrot.lane.b32.xlu0 %v1140, 64
    %v1144 = vpop.permute.xlu0 %1143
    %v1146 = vmul.f32 %v1139, %v1144
    %1148 = vrot.lane.b32.xlu0 %v1146, 32
    %v1149 = vpop.permute.xlu0 %1148
    %v1151 = vadd.f32 %v1141, %v1149
    %v1152 = vtanh.pop %v1151
    %1154 = vrot.lane.b32.xlu0 %v1152, 64
    %v1155 = vpop.permute.xlu0 %1154
    %v1157 = vmul.f32 %v1139, %v1155
    %1159 = vrot.lane.b32.xlu0 %v1157, 32
    %v1160 = vpop.permute.xlu0 %1159
    %s1162 = scalar_lea.vmem [#allocation2], 24
    %1163 = vst.msk [vmem:[%s1162] sm:$0xff] %vm229, %v1160
    %v1164 = vsel %vm229, %v1055, 0
    %1166 = vmatprep.subr.mxu0 0.0
    %1167 = vmatpush1.msra.mxu0 0.0
    %1168 = vmatprep.subr.mxu0 0.0
    %1169 = vmatpush1.msra.mxu0 0.0
    %1170 = vmatprep.subr.mxu0 0.0
    %1171 = vmatpush1.msra.mxu0 0.0
    %1172 = vmatprep.subr.mxu0 0.0
    %1173 = vmatpush1.msra.mxu0 0.0
    %1174 = vmatprep.subr.mxu0 0.0
    %1175 = vmatpush1.msra.mxu0 0.0
    %1176 = vmatprep.subr.mxu0 0.0
    %1177 = vmatpush1.msra.mxu0 0.0
    %1178 = vmatprep.subr.mxu0 0.0
    %1179 = vmatpush1.msra.mxu0 0.0
    %1180 = vmatprep.subr.mxu0 0.0
    %1181 = vmatpush1.msra.mxu0 0.0
    %1182 = vmatprep.subr.mxu0 0.0
    %1183 = vmatpush1.msra.mxu0 0.0
    %1184 = vmatprep.subr.mxu0 0.0
    %1185 = vmatpush1.msra.mxu0 0.0
    %1186 = vmatprep.subr.mxu0 0.0
    %1187 = vmatpush1.msra.mxu0 0.0
    %1188 = vmatprep.subr.mxu0 0.0
    %1189 = vmatpush1.msra.mxu0 0.0
    %1190 = vmatprep.subr.mxu0 0.0
    %1191 = vmatpush1.msra.mxu0 %v318
    %1192 = vmatprep.subr.mxu0 0.0
    %1193 = vmatpush1.msra.mxu0 %v317
    %1194 = vmatprep.subr.mxu0 0.0
    %1195 = vmatpush1.msra.mxu0 %v316
    %1196 = vmatprep.subr.mxu0 0.0
    %1197 = vmatpush1.msra.mxu0 %v315
    %1198 = vmatprep.subr.mxu0 0.0
    %1199 = vmatpush2.msra.mxu0 0.0
    %1200 = vmatprep.subr.mxu0 0.0
    %1201 = vmatpush2.msra.mxu0 0.0
    %1202 = vmatprep.subr.mxu0 0.0
    %1203 = vmatpush2.msra.mxu0 0.0
    %1204 = vmatprep.subr.mxu0 0.0
    %1205 = vmatpush2.msra.mxu0 0.0
    %1206 = vmatprep.subr.mxu0 0.0
    %1207 = vmatpush2.msra.mxu0 0.0
    %1208 = vmatprep.subr.mxu0 0.0
    %1209 = vmatpush2.msra.mxu0 0.0
    %1210 = vmatprep.subr.mxu0 0.0
    %1211 = vmatpush2.msra.mxu0 0.0
    %1212 = vmatprep.subr.mxu0 0.0
    %1213 = vmatpush2.msra.mxu0 0.0
    %1214 = vmatprep.subr.mxu0 0.0
    %1215 = vmatpush2.msra.mxu0 0.0
    %1216 = vmatprep.subr.mxu0 0.0
    %1217 = vmatpush2.msra.mxu0 0.0
    %1218 = vmatprep.subr.mxu0 0.0
    %1219 = vmatpush2.msra.mxu0 0.0
    %1220 = vmatprep.subr.mxu0 0.0
    %1221 = vmatpush2.msra.mxu0 0.0
    %1222 = vmatprep.subr.mxu0 0.0
    %1223 = vmatpush2.msra.mxu0 0.0
    %1224 = vmatprep.subr.mxu0 0.0
    %1225 = vmatpush2.msra.mxu0 0.0
    %1226 = vmatprep.subr.mxu0 0.0
    %1227 = vmatpush2.msra.mxu0 0.0
    %1228 = vmatprep.subr.mxu0 0.0
    %1229 = vmatpush2.msra.mxu0 0.0
    %1230 = vmatprep.mubr.f32.mxu0 0.0
    %1231 = vmatmul.mubr.f32.gmra.mxu0 %v1164
    %v1232 = vpop.f32.mrf.mxu0
    %v1233 = vadd.f32 0.0, %v1232
    %v1234 = vpop.f32.mrf.mxu0
    %1235 = vdwg.mxu0
    %v1236 = vadd.f32 %v312, %v1233
    %v1237 = vxor.u32 %v1236, 2147483648
    %v1238 = vmul.f32 %v1237, 1.442695
    %v1239 = vpow.pop %v1238
    %v1240 = vadd.f32 %v1239, 1.0
    %v1241 = vrcp.pop %v1240
    %v1242 = vmul.f32 1.0, %v1241
    %v1243 = vtanh.pop %v1236
    %v1244 = vmul.f32 %v1242, %v1046
    %1246 = vrot.lane.b32.xlu0 %v1243, 64
    %v1247 = vpop.permute.xlu0 %1246
    %v1249 = vmul.f32 %v1242, %v1247
    %1251 = vrot.lane.b32.xlu0 %v1249, 32
    %v1252 = vpop.permute.xlu0 %1251
    %v1254 = vadd.f32 %v1244, %v1252
    %v1255 = vtanh.pop %v1254
    %1257 = vrot.lane.b32.xlu0 %v1255, 64
    %v1258 = vpop.permute.xlu0 %1257
    %v1260 = vmul.f32 %v1242, %v1258
    %1262 = vrot.lane.b32.xlu0 %v1260, 32
    %v1263 = vpop.permute.xlu0 %1262
    %1265 = vrot.lane.b32.xlu0 %v1157, 64
    %v1266 = vpop.permute.xlu0 %1265
    %v1268 = vsel %vm229, %v1263, %v1266
    %v1270 = vsel %vm437, %v1268, 0
    %1272 = vmatprep.subr.mxu0 0.0
    %1273 = vmatpush1.msra.mxu0 0.0
    %1274 = vmatprep.subr.mxu0 0.0
    %1275 = vmatpush1.msra.mxu0 0.0
    %1276 = vmatprep.subr.mxu0 0.0
    %1277 = vmatpush1.msra.mxu0 0.0
    %1278 = vmatprep.subr.mxu0 0.0
    %1279 = vmatpush1.msra.mxu0 0.0
    %1280 = vmatprep.subr.mxu0 0.0
    %1281 = vmatpush1.msra.mxu0 0.0
    %1282 = vmatprep.subr.mxu0 0.0
    %1283 = vmatpush1.msra.mxu0 0.0
    %1284 = vmatprep.subr.mxu0 0.0
    %1285 = vmatpush1.msra.mxu0 0.0
    %1286 = vmatprep.subr.mxu0 0.0
    %1287 = vmatpush1.msra.mxu0 0.0
    %1288 = vmatprep.subr.mxu0 0.0
    %1289 = vmatpush1.msra.mxu0 %v326
    %1290 = vmatprep.subr.mxu0 0.0
    %1291 = vmatpush1.msra.mxu0 %v325
    %1292 = vmatprep.subr.mxu0 0.0
    %1293 = vmatpush1.msra.mxu0 %v324
    %1294 = vmatprep.subr.mxu0 0.0
    %1295 = vmatpush1.msra.mxu0 %v323
    %1296 = vmatprep.subr.mxu0 0.0
    %1297 = vmatpush1.msra.mxu0 %v322
    %1298 = vmatprep.subr.mxu0 0.0
    %1299 = vmatpush1.msra.mxu0 %v321
    %1300 = vmatprep.subr.mxu0 0.0
    %1301 = vmatpush1.msra.mxu0 %v320
    %1302 = vmatprep.subr.mxu0 0.0
    %1303 = vmatpush1.msra.mxu0 %v319
    %1304 = vmatprep.subr.mxu0 0.0
    %1305 = vmatpush2.msra.mxu0 0.0
    %1306 = vmatprep.subr.mxu0 0.0
    %1307 = vmatpush2.msra.mxu0 0.0
    %1308 = vmatprep.subr.mxu0 0.0
    %1309 = vmatpush2.msra.mxu0 0.0
    %1310 = vmatprep.subr.mxu0 0.0
    %1311 = vmatpush2.msra.mxu0 0.0
    %1312 = vmatprep.subr.mxu0 0.0
    %1313 = vmatpush2.msra.mxu0 0.0
    %1314 = vmatprep.subr.mxu0 0.0
    %1315 = vmatpush2.msra.mxu0 0.0
    %1316 = vmatprep.subr.mxu0 0.0
    %1317 = vmatpush2.msra.mxu0 0.0
    %1318 = vmatprep.subr.mxu0 0.0
    %1319 = vmatpush2.msra.mxu0 0.0
    %1320 = vmatprep.subr.mxu0 0.0
    %1321 = vmatpush2.msra.mxu0 0.0
    %1322 = vmatprep.subr.mxu0 0.0
    %1323 = vmatpush2.msra.mxu0 0.0
    %1324 = vmatprep.subr.mxu0 0.0
    %1325 = vmatpush2.msra.mxu0 0.0
    %1326 = vmatprep.subr.mxu0 0.0
    %1327 = vmatpush2.msra.mxu0 0.0
    %1328 = vmatprep.subr.mxu0 0.0
    %1329 = vmatpush2.msra.mxu0 0.0
    %1330 = vmatprep.subr.mxu0 0.0
    %1331 = vmatpush2.msra.mxu0 0.0
    %1332 = vmatprep.subr.mxu0 0.0
    %1333 = vmatpush2.msra.mxu0 0.0
    %1334 = vmatprep.subr.mxu0 0.0
    %1335 = vmatpush2.msra.mxu0 0.0
    %1336 = vmatprep.mubr.f32.mxu0 0.0
    %1337 = vmatmul.mubr.f32.gmra.mxu0 %v1270
    %v1338 = vpop.f32.mrf.mxu0
    %v1339 = vadd.f32 %v435, %v1338
    %v1340 = vpop.f32.mrf.mxu0
    %1341 = vdwg.mxu0
    %v1342 = vxor.u32 %v1339, 2147483648
    %v1343 = vmul.f32 %v1342, 1.442695
    %v1344 = vpow.pop %v1343
    %v1345 = vadd.f32 %v1344, 1.0
    %v1346 = vrcp.pop %v1345
    %v1347 = vmul.f32 1.0, %v1346
    %v1348 = vtanh.pop %v1339
    %v1349 = vmul.f32 %v1347, %v1151
    %1351 = vrot.lane.b32.xlu0 %v1348, 64
    %v1352 = vpop.permute.xlu0 %1351
    %v1354 = vmul.f32 %v1347, %v1352
    %1356 = vrot.lane.b32.xlu0 %v1354, 32
    %v1357 = vpop.permute.xlu0 %1356
    %v1359 = vadd.f32 %v1349, %v1357
    %v1360 = vtanh.pop %v1359
    %1362 = vrot.lane.b32.xlu0 %v1360, 64
    %v1363 = vpop.permute.xlu0 %1362
    %v1365 = vmul.f32 %v1347, %v1363
    %1367 = vrot.lane.b32.xlu0 %v1365, 32
    %v1368 = vpop.permute.xlu0 %1367
    %s1370 = scalar_lea.vmem [#allocation2], 32
    %1371 = vst.msk [vmem:[%s1370] sm:$0xff] %vm229, %v1368
    %v1372 = vsel %vm229, %v1263, 0
    %1374 = vmatprep.subr.mxu0 0.0
    %1375 = vmatpush1.msra.mxu0 0.0
    %1376 = vmatprep.subr.mxu0 0.0
    %1377 = vmatpush1.msra.mxu0 0.0
    %1378 = vmatprep.subr.mxu0 0.0
    %1379 = vmatpush1.msra.mxu0 0.0
    %1380 = vmatprep.subr.mxu0 0.0
    %1381 = vmatpush1.msra.mxu0 0.0
    %1382 = vmatprep.subr.mxu0 0.0
    %1383 = vmatpush1.msra.mxu0 0.0
    %1384 = vmatprep.subr.mxu0 0.0
    %1385 = vmatpush1.msra.mxu0 0.0
    %1386 = vmatprep.subr.mxu0 0.0
    %1387 = vmatpush1.msra.mxu0 0.0
    %1388 = vmatprep.subr.mxu0 0.0
    %1389 = vmatpush1.msra.mxu0 0.0
    %1390 = vmatprep.subr.mxu0 0.0
    %1391 = vmatpush1.msra.mxu0 0.0
    %1392 = vmatprep.subr.mxu0 0.0
    %1393 = vmatpush1.msra.mxu0 0.0
    %1394 = vmatprep.subr.mxu0 0.0
    %1395 = vmatpush1.msra.mxu0 0.0
    %1396 = vmatprep.subr.mxu0 0.0
    %1397 = vmatpush1.msra.mxu0 0.0
    %1398 = vmatprep.subr.mxu0 0.0
    %1399 = vmatpush1.msra.mxu0 %v318
    %1400 = vmatprep.subr.mxu0 0.0
    %1401 = vmatpush1.msra.mxu0 %v317
    %1402 = vmatprep.subr.mxu0 0.0
    %1403 = vmatpush1.msra.mxu0 %v316
    %1404 = vmatprep.subr.mxu0 0.0
    %1405 = vmatpush1.msra.mxu0 %v315
    %1406 = vmatprep.subr.mxu0 0.0
    %1407 = vmatpush2.msra.mxu0 0.0
    %1408 = vmatprep.subr.mxu0 0.0
    %1409 = vmatpush2.msra.mxu0 0.0
    %1410 = vmatprep.subr.mxu0 0.0
    %1411 = vmatpush2.msra.mxu0 0.0
    %1412 = vmatprep.subr.mxu0 0.0
    %1413 = vmatpush2.msra.mxu0 0.0
    %1414 = vmatprep.subr.mxu0 0.0
    %1415 = vmatpush2.msra.mxu0 0.0
    %1416 = vmatprep.subr.mxu0 0.0
    %1417 = vmatpush2.msra.mxu0 0.0
    %1418 = vmatprep.subr.mxu0 0.0
    %1419 = vmatpush2.msra.mxu0 0.0
    %1420 = vmatprep.subr.mxu0 0.0
    %1421 = vmatpush2.msra.mxu0 0.0
    %1422 = vmatprep.subr.mxu0 0.0
    %1423 = vmatpush2.msra.mxu0 0.0
    %1424 = vmatprep.subr.mxu0 0.0
    %1425 = vmatpush2.msra.mxu0 0.0
    %1426 = vmatprep.subr.mxu0 0.0
    %1427 = vmatpush2.msra.mxu0 0.0
    %1428 = vmatprep.subr.mxu0 0.0
    %1429 = vmatpush2.msra.mxu0 0.0
    %1430 = vmatprep.subr.mxu0 0.0
    %1431 = vmatpush2.msra.mxu0 0.0
    %1432 = vmatprep.subr.mxu0 0.0
    %1433 = vmatpush2.msra.mxu0 0.0
    %1434 = vmatprep.subr.mxu0 0.0
    %1435 = vmatpush2.msra.mxu0 0.0
    %1436 = vmatprep.subr.mxu0 0.0
    %1437 = vmatpush2.msra.mxu0 0.0
    %1438 = vmatprep.mubr.f32.mxu0 0.0
    %1439 = vmatmul.mubr.f32.gmra.mxu0 %v1372
    %v1440 = vpop.f32.mrf.mxu0
    %v1441 = vadd.f32 0.0, %v1440
    %v1442 = vpop.f32.mrf.mxu0
    %1443 = vdwg.mxu0
    %v1444 = vadd.f32 %v312, %v1441
    %v1445 = vxor.u32 %v1444, 2147483648
    %v1446 = vmul.f32 %v1445, 1.442695
    %v1447 = vpow.pop %v1446
    %v1448 = vadd.f32 %v1447, 1.0
    %v1449 = vrcp.pop %v1448
    %v1450 = vmul.f32 1.0, %v1449
    %v1451 = vtanh.pop %v1444
    %v1452 = vmul.f32 %v1450, %v1254
    %1454 = vrot.lane.b32.xlu0 %v1451, 64
    %v1455 = vpop.permute.xlu0 %1454
    %v1457 = vmul.f32 %v1450, %v1455
    %1459 = vrot.lane.b32.xlu0 %v1457, 32
    %v1460 = vpop.permute.xlu0 %1459
    %v1462 = vadd.f32 %v1452, %v1460
    %v1463 = vtanh.pop %v1462
    %1465 = vrot.lane.b32.xlu0 %v1463, 64
    %v1466 = vpop.permute.xlu0 %1465
    %v1468 = vmul.f32 %v1450, %v1466
    %1470 = vrot.lane.b32.xlu0 %v1468, 32
    %v1471 = vpop.permute.xlu0 %1470
    %1473 = vrot.lane.b32.xlu0 %v1365, 64
    %v1474 = vpop.permute.xlu0 %1473
    %v1476 = vsel %vm229, %v1471, %v1474
    %v1478 = vsel %vm437, %v1476, 0
    %1480 = vmatprep.subr.mxu0 0.0
    %1481 = vmatpush1.msra.mxu0 0.0
    %1482 = vmatprep.subr.mxu0 0.0
    %1483 = vmatpush1.msra.mxu0 0.0
    %1484 = vmatprep.subr.mxu0 0.0
    %1485 = vmatpush1.msra.mxu0 0.0
    %1486 = vmatprep.subr.mxu0 0.0
    %1487 = vmatpush1.msra.mxu0 0.0
    %1488 = vmatprep.subr.mxu0 0.0
    %1489 = vmatpush1.msra.mxu0 0.0
    %1490 = vmatprep.subr.mxu0 0.0
    %1491 = vmatpush1.msra.mxu0 0.0
    %1492 = vmatprep.subr.mxu0 0.0
    %1493 = vmatpush1.msra.mxu0 0.0
    %1494 = vmatprep.subr.mxu0 0.0
    %1495 = vmatpush1.msra.mxu0 0.0
    %1496 = vmatprep.subr.mxu0 0.0
    %1497 = vmatpush1.msra.mxu0 %v326
    %1498 = vmatprep.subr.mxu0 0.0
    %1499 = vmatpush1.msra.mxu0 %v325
    %1500 = vmatprep.subr.mxu0 0.0
    %1501 = vmatpush1.msra.mxu0 %v324
    %1502 = vmatprep.subr.mxu0 0.0
    %1503 = vmatpush1.msra.mxu0 %v323
    %1504 = vmatprep.subr.mxu0 0.0
    %1505 = vmatpush1.msra.mxu0 %v322
    %1506 = vmatprep.subr.mxu0 0.0
    %1507 = vmatpush1.msra.mxu0 %v321
    %1508 = vmatprep.subr.mxu0 0.0
    %1509 = vmatpush1.msra.mxu0 %v320
    %1510 = vmatprep.subr.mxu0 0.0
    %1511 = vmatpush1.msra.mxu0 %v319
    %1512 = vmatprep.subr.mxu0 0.0
    %1513 = vmatpush2.msra.mxu0 0.0
    %1514 = vmatprep.subr.mxu0 0.0
    %1515 = vmatpush2.msra.mxu0 0.0
    %1516 = vmatprep.subr.mxu0 0.0
    %1517 = vmatpush2.msra.mxu0 0.0
    %1518 = vmatprep.subr.mxu0 0.0
    %1519 = vmatpush2.msra.mxu0 0.0
    %1520 = vmatprep.subr.mxu0 0.0
    %1521 = vmatpush2.msra.mxu0 0.0
    %1522 = vmatprep.subr.mxu0 0.0
    %1523 = vmatpush2.msra.mxu0 0.0
    %1524 = vmatprep.subr.mxu0 0.0
    %1525 = vmatpush2.msra.mxu0 0.0
    %1526 = vmatprep.subr.mxu0 0.0
    %1527 = vmatpush2.msra.mxu0 0.0
    %1528 = vmatprep.subr.mxu0 0.0
    %1529 = vmatpush2.msra.mxu0 0.0
    %1530 = vmatprep.subr.mxu0 0.0
    %1531 = vmatpush2.msra.mxu0 0.0
    %1532 = vmatprep.subr.mxu0 0.0
    %1533 = vmatpush2.msra.mxu0 0.0
    %1534 = vmatprep.subr.mxu0 0.0
    %1535 = vmatpush2.msra.mxu0 0.0
    %1536 = vmatprep.subr.mxu0 0.0
    %1537 = vmatpush2.msra.mxu0 0.0
    %1538 = vmatprep.subr.mxu0 0.0
    %1539 = vmatpush2.msra.mxu0 0.0
    %1540 = vmatprep.subr.mxu0 0.0
    %1541 = vmatpush2.msra.mxu0 0.0
    %1542 = vmatprep.subr.mxu0 0.0
    %1543 = vmatpush2.msra.mxu0 0.0
    %1544 = vmatprep.mubr.f32.mxu0 0.0
    %1545 = vmatmul.mubr.f32.gmra.mxu0 %v1478
    %v1546 = vpop.f32.mrf.mxu0
    %v1547 = vadd.f32 %v435, %v1546
    %v1548 = vpop.f32.mrf.mxu0
    %1549 = vdwg.mxu0
    %v1550 = vxor.u32 %v1547, 2147483648
    %v1551 = vmul.f32 %v1550, 1.442695
    %v1552 = vpow.pop %v1551
    %v1553 = vadd.f32 %v1552, 1.0
    %v1554 = vrcp.pop %v1553
    %v1555 = vmul.f32 1.0, %v1554
    %v1556 = vtanh.pop %v1547
    %v1557 = vmul.f32 %v1555, %v1359
    %1559 = vrot.lane.b32.xlu0 %v1556, 64
    %v1560 = vpop.permute.xlu0 %1559
    %v1562 = vmul.f32 %v1555, %v1560
    %1564 = vrot.lane.b32.xlu0 %v1562, 32
    %v1565 = vpop.permute.xlu0 %1564
    %v1567 = vadd.f32 %v1557, %v1565
    %v1568 = vtanh.pop %v1567
    %1570 = vrot.lane.b32.xlu0 %v1568, 64
    %v1571 = vpop.permute.xlu0 %1570
    %v1573 = vmul.f32 %v1555, %v1571
    %1575 = vrot.lane.b32.xlu0 %v1573, 32
    %v1576 = vpop.permute.xlu0 %1575
    %s1578 = scalar_lea.vmem [#allocation2], 40
    %1579 = vst.msk [vmem:[%s1578] sm:$0xff] %vm229, %v1576
    %v1580 = vsel %vm229, %v1471, 0
    %1582 = vmatprep.subr.mxu0 0.0
    %1583 = vmatpush1.msra.mxu0 0.0
    %1584 = vmatprep.subr.mxu0 0.0
    %1585 = vmatpush1.msra.mxu0 0.0
    %1586 = vmatprep.subr.mxu0 0.0
    %1587 = vmatpush1.msra.mxu0 0.0
    %1588 = vmatprep.subr.mxu0 0.0
    %1589 = vmatpush1.msra.mxu0 0.0
    %1590 = vmatprep.subr.mxu0 0.0
    %1591 = vmatpush1.msra.mxu0 0.0
    %1592 = vmatprep.subr.mxu0 0.0
    %1593 = vmatpush1.msra.mxu0 0.0
    %1594 = vmatprep.subr.mxu0 0.0
    %1595 = vmatpush1.msra.mxu0 0.0
    %1596 = vmatprep.subr.mxu0 0.0
    %1597 = vmatpush1.msra.mxu0 0.0
    %1598 = vmatprep.subr.mxu0 0.0
    %1599 = vmatpush1.msra.mxu0 0.0
    %1600 = vmatprep.subr.mxu0 0.0
    %1601 = vmatpush1.msra.mxu0 0.0
    %1602 = vmatprep.subr.mxu0 0.0
    %1603 = vmatpush1.msra.mxu0 0.0
    %1604 = vmatprep.subr.mxu0 0.0
    %1605 = vmatpush1.msra.mxu0 0.0
    %1606 = vmatprep.subr.mxu0 0.0
    %1607 = vmatpush1.msra.mxu0 %v318
    %1608 = vmatprep.subr.mxu0 0.0
    %1609 = vmatpush1.msra.mxu0 %v317
    %1610 = vmatprep.subr.mxu0 0.0
    %1611 = vmatpush1.msra.mxu0 %v316
    %1612 = vmatprep.subr.mxu0 0.0
    %1613 = vmatpush1.msra.mxu0 %v315
    %1614 = vmatprep.subr.mxu0 0.0
    %1615 = vmatpush2.msra.mxu0 0.0
    %1616 = vmatprep.subr.mxu0 0.0
    %1617 = vmatpush2.msra.mxu0 0.0
    %1618 = vmatprep.subr.mxu0 0.0
    %1619 = vmatpush2.msra.mxu0 0.0
    %1620 = vmatprep.subr.mxu0 0.0
    %1621 = vmatpush2.msra.mxu0 0.0
    %1622 = vmatprep.subr.mxu0 0.0
    %1623 = vmatpush2.msra.mxu0 0.0
    %1624 = vmatprep.subr.mxu0 0.0
    %1625 = vmatpush2.msra.mxu0 0.0
    %1626 = vmatprep.subr.mxu0 0.0
    %1627 = vmatpush2.msra.mxu0 0.0
    %1628 = vmatprep.subr.mxu0 0.0
    %1629 = vmatpush2.msra.mxu0 0.0
    %1630 = vmatprep.subr.mxu0 0.0
    %1631 = vmatpush2.msra.mxu0 0.0
    %1632 = vmatprep.subr.mxu0 0.0
    %1633 = vmatpush2.msra.mxu0 0.0
    %1634 = vmatprep.subr.mxu0 0.0
    %1635 = vmatpush2.msra.mxu0 0.0
    %1636 = vmatprep.subr.mxu0 0.0
    %1637 = vmatpush2.msra.mxu0 0.0
    %1638 = vmatprep.subr.mxu0 0.0
    %1639 = vmatpush2.msra.mxu0 0.0
    %1640 = vmatprep.subr.mxu0 0.0
    %1641 = vmatpush2.msra.mxu0 0.0
    %1642 = vmatprep.subr.mxu0 0.0
    %1643 = vmatpush2.msra.mxu0 0.0
    %1644 = vmatprep.subr.mxu0 0.0
    %1645 = vmatpush2.msra.mxu0 0.0
    %1646 = vmatprep.mubr.f32.mxu0 0.0
    %1647 = vmatmul.mubr.f32.gmra.mxu0 %v1580
    %v1648 = vpop.f32.mrf.mxu0
    %v1649 = vadd.f32 0.0, %v1648
    %v1650 = vpop.f32.mrf.mxu0
    %1651 = vdwg.mxu0
    %v1652 = vadd.f32 %v312, %v1649
    %v1653 = vxor.u32 %v1652, 2147483648
    %v1654 = vmul.f32 %v1653, 1.442695
    %v1655 = vpow.pop %v1654
    %v1656 = vadd.f32 %v1655, 1.0
    %v1657 = vrcp.pop %v1656
    %v1658 = vmul.f32 1.0, %v1657
    %v1659 = vtanh.pop %v1652
    %v1660 = vmul.f32 %v1658, %v1462
    %1662 = vrot.lane.b32.xlu0 %v1659, 64
    %v1663 = vpop.permute.xlu0 %1662
    %v1665 = vmul.f32 %v1658, %v1663
    %1667 = vrot.lane.b32.xlu0 %v1665, 32
    %v1668 = vpop.permute.xlu0 %1667
    %v1670 = vadd.f32 %v1660, %v1668
    %v1671 = vtanh.pop %v1670
    %1673 = vrot.lane.b32.xlu0 %v1671, 64
    %v1674 = vpop.permute.xlu0 %1673
    %v1676 = vmul.f32 %v1658, %v1674
    %1678 = vrot.lane.b32.xlu0 %v1676, 32
    %v1679 = vpop.permute.xlu0 %1678
    %1681 = vrot.lane.b32.xlu0 %v1573, 64
    %v1682 = vpop.permute.xlu0 %1681
    %v1684 = vsel %vm229, %v1679, %v1682
    %v1686 = vsel %vm437, %v1684, 0
    %1688 = vmatprep.subr.mxu0 0.0
    %1689 = vmatpush1.msra.mxu0 0.0
    %1690 = vmatprep.subr.mxu0 0.0
    %1691 = vmatpush1.msra.mxu0 0.0
    %1692 = vmatprep.subr.mxu0 0.0
    %1693 = vmatpush1.msra.mxu0 0.0
    %1694 = vmatprep.subr.mxu0 0.0
    %1695 = vmatpush1.msra.mxu0 0.0
    %1696 = vmatprep.subr.mxu0 0.0
    %1697 = vmatpush1.msra.mxu0 0.0
    %1698 = vmatprep.subr.mxu0 0.0
    %1699 = vmatpush1.msra.mxu0 0.0
    %1700 = vmatprep.subr.mxu0 0.0
    %1701 = vmatpush1.msra.mxu0 0.0
    %1702 = vmatprep.subr.mxu0 0.0
    %1703 = vmatpush1.msra.mxu0 0.0
    %1704 = vmatprep.subr.mxu0 0.0
    %1705 = vmatpush1.msra.mxu0 %v326
    %1706 = vmatprep.subr.mxu0 0.0
    %1707 = vmatpush1.msra.mxu0 %v325
    %1708 = vmatprep.subr.mxu0 0.0
    %1709 = vmatpush1.msra.mxu0 %v324
    %1710 = vmatprep.subr.mxu0 0.0
    %1711 = vmatpush1.msra.mxu0 %v323
    %1712 = vmatprep.subr.mxu0 0.0
    %1713 = vmatpush1.msra.mxu0 %v322
    %1714 = vmatprep.subr.mxu0 0.0
    %1715 = vmatpush1.msra.mxu0 %v321
    %1716 = vmatprep.subr.mxu0 0.0
    %1717 = vmatpush1.msra.mxu0 %v320
    %1718 = vmatprep.subr.mxu0 0.0
    %1719 = vmatpush1.msra.mxu0 %v319
    %1720 = vmatprep.subr.mxu0 0.0
    %1721 = vmatpush2.msra.mxu0 0.0
    %1722 = vmatprep.subr.mxu0 0.0
    %1723 = vmatpush2.msra.mxu0 0.0
    %1724 = vmatprep.subr.mxu0 0.0
    %1725 = vmatpush2.msra.mxu0 0.0
    %1726 = vmatprep.subr.mxu0 0.0
    %1727 = vmatpush2.msra.mxu0 0.0
    %1728 = vmatprep.subr.mxu0 0.0
    %1729 = vmatpush2.msra.mxu0 0.0
    %1730 = vmatprep.subr.mxu0 0.0
    %1731 = vmatpush2.msra.mxu0 0.0
    %1732 = vmatprep.subr.mxu0 0.0
    %1733 = vmatpush2.msra.mxu0 0.0
    %1734 = vmatprep.subr.mxu0 0.0
    %1735 = vmatpush2.msra.mxu0 0.0
    %1736 = vmatprep.subr.mxu0 0.0
    %1737 = vmatpush2.msra.mxu0 0.0
    %1738 = vmatprep.subr.mxu0 0.0
    %1739 = vmatpush2.msra.mxu0 0.0
    %1740 = vmatprep.subr.mxu0 0.0
    %1741 = vmatpush2.msra.mxu0 0.0
    %1742 = vmatprep.subr.mxu0 0.0
    %1743 = vmatpush2.msra.mxu0 0.0
    %1744 = vmatprep.subr.mxu0 0.0
    %1745 = vmatpush2.msra.mxu0 0.0
    %1746 = vmatprep.subr.mxu0 0.0
    %1747 = vmatpush2.msra.mxu0 0.0
    %1748 = vmatprep.subr.mxu0 0.0
    %1749 = vmatpush2.msra.mxu0 0.0
    %1750 = vmatprep.subr.mxu0 0.0
    %1751 = vmatpush2.msra.mxu0 0.0
    %1752 = vmatprep.mubr.f32.mxu0 0.0
    %1753 = vmatmul.mubr.f32.gmra.mxu0 %v1686
    %v1754 = vpop.f32.mrf.mxu0
    %v1755 = vadd.f32 %v435, %v1754
    %v1756 = vpop.f32.mrf.mxu0
    %1757 = vdwg.mxu0
    %v1758 = vxor.u32 %v1755, 2147483648
    %v1759 = vmul.f32 %v1758, 1.442695
    %v1760 = vpow.pop %v1759
    %v1761 = vadd.f32 %v1760, 1.0
    %v1762 = vrcp.pop %v1761
    %v1763 = vmul.f32 1.0, %v1762
    %v1764 = vtanh.pop %v1755
    %v1765 = vmul.f32 %v1763, %v1567
    %1767 = vrot.lane.b32.xlu0 %v1764, 64
    %v1768 = vpop.permute.xlu0 %1767
    %v1770 = vmul.f32 %v1763, %v1768
    %1772 = vrot.lane.b32.xlu0 %v1770, 32
    %v1773 = vpop.permute.xlu0 %1772
    %v1775 = vadd.f32 %v1765, %v1773
    %v1776 = vtanh.pop %v1775
    %1778 = vrot.lane.b32.xlu0 %v1776, 64
    %v1779 = vpop.permute.xlu0 %1778
    %v1781 = vmul.f32 %v1763, %v1779
    %1783 = vrot.lane.b32.xlu0 %v1781, 32
    %v1784 = vpop.permute.xlu0 %1783
    %s1786 = scalar_lea.vmem [#allocation2], 48
    %1787 = vst.msk [vmem:[%s1786] sm:$0xff] %vm229, %v1784
    %v1788 = vsel %vm229, %v1679, 0
    %1790 = vmatprep.subr.mxu0 0.0
    %1791 = vmatpush1.msra.mxu0 0.0
    %1792 = vmatprep.subr.mxu0 0.0
    %1793 = vmatpush1.msra.mxu0 0.0
    %1794 = vmatprep.subr.mxu0 0.0
    %1795 = vmatpush1.msra.mxu0 0.0
    %1796 = vmatprep.subr.mxu0 0.0
    %1797 = vmatpush1.msra.mxu0 0.0
    %1798 = vmatprep.subr.mxu0 0.0
    %1799 = vmatpush1.msra.mxu0 0.0
    %1800 = vmatprep.subr.mxu0 0.0
    %1801 = vmatpush1.msra.mxu0 0.0
    %1802 = vmatprep.subr.mxu0 0.0
    %1803 = vmatpush1.msra.mxu0 0.0
    %1804 = vmatprep.subr.mxu0 0.0
    %1805 = vmatpush1.msra.mxu0 0.0
    %1806 = vmatprep.subr.mxu0 0.0
    %1807 = vmatpush1.msra.mxu0 0.0
    %1808 = vmatprep.subr.mxu0 0.0
    %1809 = vmatpush1.msra.mxu0 0.0
    %1810 = vmatprep.subr.mxu0 0.0
    %1811 = vmatpush1.msra.mxu0 0.0
    %1812 = vmatprep.subr.mxu0 0.0
    %1813 = vmatpush1.msra.mxu0 0.0
    %1814 = vmatprep.subr.mxu0 0.0
    %1815 = vmatpush1.msra.mxu0 %v318
    %1816 = vmatprep.subr.mxu0 0.0
    %1817 = vmatpush1.msra.mxu0 %v317
    %1818 = vmatprep.subr.mxu0 0.0
    %1819 = vmatpush1.msra.mxu0 %v316
    %1820 = vmatprep.subr.mxu0 0.0
    %1821 = vmatpush1.msra.mxu0 %v315
    %1822 = vmatprep.subr.mxu0 0.0
    %1823 = vmatpush2.msra.mxu0 0.0
    %1824 = vmatprep.subr.mxu0 0.0
    %1825 = vmatpush2.msra.mxu0 0.0
    %1826 = vmatprep.subr.mxu0 0.0
    %1827 = vmatpush2.msra.mxu0 0.0
    %1828 = vmatprep.subr.mxu0 0.0
    %1829 = vmatpush2.msra.mxu0 0.0
    %1830 = vmatprep.subr.mxu0 0.0
    %1831 = vmatpush2.msra.mxu0 0.0
    %1832 = vmatprep.subr.mxu0 0.0
    %1833 = vmatpush2.msra.mxu0 0.0
    %1834 = vmatprep.subr.mxu0 0.0
    %1835 = vmatpush2.msra.mxu0 0.0
    %1836 = vmatprep.subr.mxu0 0.0
    %1837 = vmatpush2.msra.mxu0 0.0
    %1838 = vmatprep.subr.mxu0 0.0
    %1839 = vmatpush2.msra.mxu0 0.0
    %1840 = vmatprep.subr.mxu0 0.0
    %1841 = vmatpush2.msra.mxu0 0.0
    %1842 = vmatprep.subr.mxu0 0.0
    %1843 = vmatpush2.msra.mxu0 0.0
    %1844 = vmatprep.subr.mxu0 0.0
    %1845 = vmatpush2.msra.mxu0 0.0
    %1846 = vmatprep.subr.mxu0 0.0
    %1847 = vmatpush2.msra.mxu0 0.0
    %1848 = vmatprep.subr.mxu0 0.0
    %1849 = vmatpush2.msra.mxu0 0.0
    %1850 = vmatprep.subr.mxu0 0.0
    %1851 = vmatpush2.msra.mxu0 0.0
    %1852 = vmatprep.subr.mxu0 0.0
    %1853 = vmatpush2.msra.mxu0 0.0
    %1854 = vmatprep.mubr.f32.mxu0 0.0
    %1855 = vmatmul.mubr.f32.gmra.mxu0 %v1788
    %v1856 = vpop.f32.mrf.mxu0
    %v1857 = vadd.f32 0.0, %v1856
    %v1858 = vpop.f32.mrf.mxu0
    %1859 = vdwg.mxu0
    %v1860 = vadd.f32 %v312, %v1857
    %v1861 = vxor.u32 %v1860, 2147483648
    %v1862 = vmul.f32 %v1861, 1.442695
    %v1863 = vpow.pop %v1862
    %v1864 = vadd.f32 %v1863, 1.0
    %v1865 = vrcp.pop %v1864
    %v1866 = vmul.f32 1.0, %v1865
    %v1867 = vtanh.pop %v1860
    %v1868 = vmul.f32 %v1866, %v1670
    %1870 = vrot.lane.b32.xlu0 %v1867, 64
    %v1871 = vpop.permute.xlu0 %1870
    %v1873 = vmul.f32 %v1866, %v1871
    %1875 = vrot.lane.b32.xlu0 %v1873, 32
    %v1876 = vpop.permute.xlu0 %1875
    %v1878 = vadd.f32 %v1868, %v1876
    %v1879 = vtanh.pop %v1878
    %1881 = vrot.lane.b32.xlu0 %v1879, 64
    %v1882 = vpop.permute.xlu0 %1881
    %v1884 = vmul.f32 %v1866, %v1882
    %1886 = vrot.lane.b32.xlu0 %v1884, 32
    %v1887 = vpop.permute.xlu0 %1886
    %1889 = vrot.lane.b32.xlu0 %v1781, 64
    %v1890 = vpop.permute.xlu0 %1889
    %v1892 = vsel %vm229, %v1887, %v1890
    %v1894 = vsel %vm437, %v1892, 0
    %1896 = vmatprep.subr.mxu0 0.0
    %1897 = vmatpush1.msra.mxu0 0.0
    %1898 = vmatprep.subr.mxu0 0.0
    %1899 = vmatpush1.msra.mxu0 0.0
    %1900 = vmatprep.subr.mxu0 0.0
    %1901 = vmatpush1.msra.mxu0 0.0
    %1902 = vmatprep.subr.mxu0 0.0
    %1903 = vmatpush1.msra.mxu0 0.0
    %1904 = vmatprep.subr.mxu0 0.0
    %1905 = vmatpush1.msra.mxu0 0.0
    %1906 = vmatprep.subr.mxu0 0.0
    %1907 = vmatpush1.msra.mxu0 0.0
    %1908 = vmatprep.subr.mxu0 0.0
    %1909 = vmatpush1.msra.mxu0 0.0
    %1910 = vmatprep.subr.mxu0 0.0
    %1911 = vmatpush1.msra.mxu0 0.0
    %1912 = vmatprep.subr.mxu0 0.0
    %1913 = vmatpush1.msra.mxu0 %v326
    %1914 = vmatprep.subr.mxu0 0.0
    %1915 = vmatpush1.msra.mxu0 %v325
    %1916 = vmatprep.subr.mxu0 0.0
    %1917 = vmatpush1.msra.mxu0 %v324
    %1918 = vmatprep.subr.mxu0 0.0
    %1919 = vmatpush1.msra.mxu0 %v323
    %1920 = vmatprep.subr.mxu0 0.0
    %1921 = vmatpush1.msra.mxu0 %v322
    %1922 = vmatprep.subr.mxu0 0.0
    %1923 = vmatpush1.msra.mxu0 %v321
    %1924 = vmatprep.subr.mxu0 0.0
    %1925 = vmatpush1.msra.mxu0 %v320
    %1926 = vmatprep.subr.mxu0 0.0
    %1927 = vmatpush1.msra.mxu0 %v319
    %1928 = vmatprep.subr.mxu0 0.0
    %1929 = vmatpush2.msra.mxu0 0.0
    %1930 = vmatprep.subr.mxu0 0.0
    %1931 = vmatpush2.msra.mxu0 0.0
    %1932 = vmatprep.subr.mxu0 0.0
    %1933 = vmatpush2.msra.mxu0 0.0
    %1934 = vmatprep.subr.mxu0 0.0
    %1935 = vmatpush2.msra.mxu0 0.0
    %1936 = vmatprep.subr.mxu0 0.0
    %1937 = vmatpush2.msra.mxu0 0.0
    %1938 = vmatprep.subr.mxu0 0.0
    %1939 = vmatpush2.msra.mxu0 0.0
    %1940 = vmatprep.subr.mxu0 0.0
    %1941 = vmatpush2.msra.mxu0 0.0
    %1942 = vmatprep.subr.mxu0 0.0
    %1943 = vmatpush2.msra.mxu0 0.0
    %1944 = vmatprep.subr.mxu0 0.0
    %1945 = vmatpush2.msra.mxu0 0.0
    %1946 = vmatprep.subr.mxu0 0.0
    %1947 = vmatpush2.msra.mxu0 0.0
    %1948 = vmatprep.subr.mxu0 0.0
    %1949 = vmatpush2.msra.mxu0 0.0
    %1950 = vmatprep.subr.mxu0 0.0
    %1951 = vmatpush2.msra.mxu0 0.0
    %1952 = vmatprep.subr.mxu0 0.0
    %1953 = vmatpush2.msra.mxu0 0.0
    %1954 = vmatprep.subr.mxu0 0.0
    %1955 = vmatpush2.msra.mxu0 0.0
    %1956 = vmatprep.subr.mxu0 0.0
    %1957 = vmatpush2.msra.mxu0 0.0
    %1958 = vmatprep.subr.mxu0 0.0
    %1959 = vmatpush2.msra.mxu0 0.0
    %1960 = vmatprep.mubr.f32.mxu0 0.0
    %1961 = vmatmul.mubr.f32.gmra.mxu0 %v1894
    %v1962 = vpop.f32.mrf.mxu0
    %v1963 = vadd.f32 %v435, %v1962
    %v1964 = vpop.f32.mrf.mxu0
    %1965 = vdwg.mxu0
    %v1966 = vxor.u32 %v1963, 2147483648
    %v1967 = vmul.f32 %v1966, 1.442695
    %v1968 = vpow.pop %v1967
    %v1969 = vadd.f32 %v1968, 1.0
    %v1970 = vrcp.pop %v1969
    %v1971 = vmul.f32 1.0, %v1970
    %v1972 = vtanh.pop %v1963
    %v1973 = vmul.f32 %v1971, %v1775
    %1975 = vrot.lane.b32.xlu0 %v1972, 64
    %v1976 = vpop.permute.xlu0 %1975
    %v1978 = vmul.f32 %v1971, %v1976
    %1980 = vrot.lane.b32.xlu0 %v1978, 32
    %v1981 = vpop.permute.xlu0 %1980
    %v1983 = vadd.f32 %v1973, %v1981
    %v1984 = vtanh.pop %v1983
    %1986 = vrot.lane.b32.xlu0 %v1984, 64
    %v1987 = vpop.permute.xlu0 %1986
    %v1989 = vmul.f32 %v1971, %v1987
    %1991 = vrot.lane.b32.xlu0 %v1989, 32
    %v1992 = vpop.permute.xlu0 %1991
    %s1994 = scalar_lea.vmem [#allocation2], 56
    %1995 = vst.msk [vmem:[%s1994] sm:$0xff] %vm229, %v1992
    %v1996 = vld [vmem:[#allocation2] sm:$0xff]
    %v1997 = vld [vmem:[#allocation2 + $0x8] sm:$0xff]
    %v1998 = vld [vmem:[#allocation2 + $0x10] sm:$0xff]
    %v1999 = vld [vmem:[#allocation2 + $0x18] sm:$0xff]
    %v2000 = vld [vmem:[#allocation2 + $0x20] sm:$0xff]
    %v2001 = vld [vmem:[#allocation2 + $0x28] sm:$0xff]
    %v2002 = vld [vmem:[#allocation2 + $0x30] sm:$0xff]
    %v2003 = vld [vmem:[#allocation2 + $0x38] sm:$0xff]
    %v2004 = vld [vmem:[%s8] sm:$0xff]
    %v2005 = vld [vmem:[%s8 + $0x8] sm:$0xff]
    %v2006 = vld [vmem:[%s8 + $0x10] sm:$0xff]
    %v2007 = vld [vmem:[%s8 + $0x18] sm:$0xff]
    %v2008 = vld [vmem:[#allocation15] sm:$0x1]
    %v2010 = vlaneseq
    %v2011 = vshrl.u32 %v2010, 7
    %v2012 = vsub.s32 0, %v2011
    %v2013 = vrot.slane %v2008, %v2012
    %v2016 = vsel %vm229, %v1996, 0
    %v2019 = vsel %vm229, %v1997, 0
    %v2022 = vsel %vm229, %v1998, 0
    %v2025 = vsel %vm229, %v1999, 0
    %v2028 = vsel %vm229, %v2000, 0
    %v2031 = vsel %vm229, %v2001, 0
    %v2034 = vsel %vm229, %v2002, 0
    %v2037 = vsel %vm229, %v2003, 0
    %2039 = vmatprep.subr.mxu0 0.0
    %2040 = vmatpush1.msra.mxu0 0.0
    %2041 = vmatprep.subr.mxu0 0.0
    %2042 = vmatpush1.msra.mxu0 0.0
    %2043 = vmatprep.subr.mxu0 0.0
    %2044 = vmatpush1.msra.mxu0 0.0
    %2045 = vmatprep.subr.mxu0 0.0
    %2046 = vmatpush1.msra.mxu0 0.0
    %2047 = vmatprep.subr.mxu0 0.0
    %2048 = vmatpush1.msra.mxu0 0.0
    %2049 = vmatprep.subr.mxu0 0.0
    %2050 = vmatpush1.msra.mxu0 0.0
    %2051 = vmatprep.subr.mxu0 0.0
    %2052 = vmatpush1.msra.mxu0 0.0
    %2053 = vmatprep.subr.mxu0 0.0
    %2054 = vmatpush1.msra.mxu0 0.0
    %2055 = vmatprep.subr.mxu0 0.0
    %2056 = vmatpush1.msra.mxu0 0.0
    %2057 = vmatprep.subr.mxu0 0.0
    %2058 = vmatpush1.msra.mxu0 0.0
    %2059 = vmatprep.subr.mxu0 0.0
    %2060 = vmatpush1.msra.mxu0 0.0
    %2061 = vmatprep.subr.mxu0 0.0
    %2062 = vmatpush1.msra.mxu0 0.0
    %2063 = vmatprep.subr.mxu0 0.0
    %2064 = vmatpush1.msra.mxu0 %v2007
    %2065 = vmatprep.subr.mxu0 0.0
    %2066 = vmatpush1.msra.mxu0 %v2006
    %2067 = vmatprep.subr.mxu0 0.0
    %2068 = vmatpush1.msra.mxu0 %v2005
    %2069 = vmatprep.subr.mxu0 0.0
    %2070 = vmatpush1.msra.mxu0 %v2004
    %2071 = vmatprep.subr.mxu0 0.0
    %2072 = vmatpush2.msra.mxu0 0.0
    %2073 = vmatprep.subr.mxu0 0.0
    %2074 = vmatpush2.msra.mxu0 0.0
    %2075 = vmatprep.subr.mxu0 0.0
    %2076 = vmatpush2.msra.mxu0 0.0
    %2077 = vmatprep.subr.mxu0 0.0
    %2078 = vmatpush2.msra.mxu0 0.0
    %2079 = vmatprep.subr.mxu0 0.0
    %2080 = vmatpush2.msra.mxu0 0.0
    %2081 = vmatprep.subr.mxu0 0.0
    %2082 = vmatpush2.msra.mxu0 0.0
    %2083 = vmatprep.subr.mxu0 0.0
    %2084 = vmatpush2.msra.mxu0 0.0
    %2085 = vmatprep.subr.mxu0 0.0
    %2086 = vmatpush2.msra.mxu0 0.0
    %2087 = vmatprep.subr.mxu0 0.0
    %2088 = vmatpush2.msra.mxu0 0.0
    %2089 = vmatprep.subr.mxu0 0.0
    %2090 = vmatpush2.msra.mxu0 0.0
    %2091 = vmatprep.subr.mxu0 0.0
    %2092 = vmatpush2.msra.mxu0 0.0
    %2093 = vmatprep.subr.mxu0 0.0
    %2094 = vmatpush2.msra.mxu0 0.0
    %2095 = vmatprep.subr.mxu0 0.0
    %2096 = vmatpush2.msra.mxu0 0.0
    %2097 = vmatprep.subr.mxu0 0.0
    %2098 = vmatpush2.msra.mxu0 0.0
    %2099 = vmatprep.subr.mxu0 0.0
    %2100 = vmatpush2.msra.mxu0 0.0
    %2101 = vmatprep.subr.mxu0 0.0
    %2102 = vmatpush2.msra.mxu0 0.0
    %2103 = vmatprep.mubr.f32.mxu0 0.0
    %2104 = vmatmul.mubr.f32.gmra.mxu0 %v2016
    %v2105 = vpop.f32.mrf.mxu0
    %v2106 = vadd.f32 %v2013, %v2105
    %v2107 = vpop.f32.mrf.mxu0
    %2108 = vmatprep.mubr.f32.mxu0 0.0
    %2109 = vmatmul.mubr.f32.gmra.mxu0 %v2019
    %v2110 = vpop.f32.mrf.mxu0
    %v2111 = vadd.f32 %v2013, %v2110
    %v2112 = vpop.f32.mrf.mxu0
    %2113 = vmatprep.mubr.f32.mxu0 0.0
    %2114 = vmatmul.mubr.f32.gmra.mxu0 %v2022
    %v2115 = vpop.f32.mrf.mxu0
    %v2116 = vadd.f32 %v2013, %v2115
    %v2117 = vpop.f32.mrf.mxu0
    %2118 = vmatprep.mubr.f32.mxu0 0.0
    %2119 = vmatmul.mubr.f32.gmra.mxu0 %v2025
    %v2120 = vpop.f32.mrf.mxu0
    %v2121 = vadd.f32 %v2013, %v2120
    %v2122 = vpop.f32.mrf.mxu0
    %2123 = vmatprep.mubr.f32.mxu0 0.0
    %2124 = vmatmul.mubr.f32.gmra.mxu0 %v2028
    %v2125 = vpop.f32.mrf.mxu0
    %v2126 = vadd.f32 %v2013, %v2125
    %v2127 = vpop.f32.mrf.mxu0
    %2128 = vmatprep.mubr.f32.mxu0 0.0
    %2129 = vmatmul.mubr.f32.gmra.mxu0 %v2031
    %v2130 = vpop.f32.mrf.mxu0
    %v2131 = vadd.f32 %v2013, %v2130
    %v2132 = vpop.f32.mrf.mxu0
    %2133 = vmatprep.mubr.f32.mxu0 0.0
    %2134 = vmatmul.mubr.f32.gmra.mxu0 %v2034
    %v2135 = vpop.f32.mrf.mxu0
    %v2136 = vadd.f32 %v2013, %v2135
    %v2137 = vpop.f32.mrf.mxu0
    %2138 = vmatprep.mubr.f32.mxu0 0.0
    %2139 = vmatmul.mubr.f32.gmra.mxu0 %v2037
    %v2140 = vpop.f32.mrf.mxu0
    %v2141 = vadd.f32 %v2013, %v2140
    %v2142 = vpop.f32.mrf.mxu0
    %2143 = vdwg.mxu0
    %2144 = vst.msk [vmem:[#allocation18] sm:$0xff] %vm155, %v2106
    %2145 = vst.msk [vmem:[#allocation18 + $0x8] sm:$0xff] %vm155, %v2111
    %2146 = vst.msk [vmem:[#allocation18 + $0x10] sm:$0xff] %vm155, %v2116
    %2147 = vst.msk [vmem:[#allocation18 + $0x18] sm:$0xff] %vm155, %v2121
    %2148 = vst.msk [vmem:[#allocation18 + $0x20] sm:$0xff] %vm155, %v2126
    %2149 = vst.msk [vmem:[#allocation18 + $0x28] sm:$0xff] %vm155, %v2131
    %2150 = vst.msk [vmem:[#allocation18 + $0x30] sm:$0xff] %vm155, %v2136
    %2151 = vst.msk [vmem:[#allocation18 + $0x38] sm:$0xff] %vm155, %v2141
    %v2152 = vld [vmem:[%s10] sm:$0xff]
    %v2153 = vld [vmem:[%s10 + $0x8] sm:$0xff]
    %v2154 = vld [vmem:[%s11] sm:$0x1]
    %v2156 = vlaneseq
    %v2157 = vshrl.u32 %v2156, 7
    %v2158 = vsub.s32 0, %v2157
    %v2159 = vrot.slane %v2154, %v2158
    %v2162 = vsel %vm155, %v2106, 0
    %v2165 = vsel %vm155, %v2111, 0
    %v2168 = vsel %vm155, %v2116, 0
    %v2171 = vsel %vm155, %v2121, 0
    %v2174 = vsel %vm155, %v2126, 0
    %v2177 = vsel %vm155, %v2131, 0
    %v2180 = vsel %vm155, %v2136, 0
    %v2183 = vsel %vm155, %v2141, 0
    %2185 = vmatprep.subr.mxu0 0.0
    %2186 = vmatpush1.msra.mxu0 0.0
    %2187 = vmatprep.subr.mxu0 0.0
    %2188 = vmatpush1.msra.mxu0 0.0
    %2189 = vmatprep.subr.mxu0 0.0
    %2190 = vmatpush1.msra.mxu0 0.0
    %2191 = vmatprep.subr.mxu0 0.0
    %2192 = vmatpush1.msra.mxu0 0.0
    %2193 = vmatprep.subr.mxu0 0.0
    %2194 = vmatpush1.msra.mxu0 0.0
    %2195 = vmatprep.subr.mxu0 0.0
    %2196 = vmatpush1.msra.mxu0 0.0
    %2197 = vmatprep.subr.mxu0 0.0
    %2198 = vmatpush1.msra.mxu0 0.0
    %2199 = vmatprep.subr.mxu0 0.0
    %2200 = vmatpush1.msra.mxu0 0.0
    %2201 = vmatprep.subr.mxu0 0.0
    %2202 = vmatpush1.msra.mxu0 0.0
    %2203 = vmatprep.subr.mxu0 0.0
    %2204 = vmatpush1.msra.mxu0 0.0
    %2205 = vmatprep.subr.mxu0 0.0
    %2206 = vmatpush1.msra.mxu0 0.0
    %2207 = vmatprep.subr.mxu0 0.0
    %2208 = vmatpush1.msra.mxu0 0.0
    %2209 = vmatprep.subr.mxu0 0.0
    %2210 = vmatpush1.msra.mxu0 0.0
    %2211 = vmatprep.subr.mxu0 0.0
    %2212 = vmatpush1.msra.mxu0 0.0
    %2213 = vmatprep.subr.mxu0 0.0
    %2214 = vmatpush1.msra.mxu0 %v2153
    %2215 = vmatprep.subr.mxu0 0.0
    %2216 = vmatpush1.msra.mxu0 %v2152
    %2217 = vmatprep.subr.mxu0 0.0
    %2218 = vmatpush2.msra.mxu0 0.0
    %2219 = vmatprep.subr.mxu0 0.0
    %2220 = vmatpush2.msra.mxu0 0.0
    %2221 = vmatprep.subr.mxu0 0.0
    %2222 = vmatpush2.msra.mxu0 0.0
    %2223 = vmatprep.subr.mxu0 0.0
    %2224 = vmatpush2.msra.mxu0 0.0
    %2225 = vmatprep.subr.mxu0 0.0
    %2226 = vmatpush2.msra.mxu0 0.0
    %2227 = vmatprep.subr.mxu0 0.0
    %2228 = vmatpush2.msra.mxu0 0.0
    %2229 = vmatprep.subr.mxu0 0.0
    %2230 = vmatpush2.msra.mxu0 0.0
    %2231 = vmatprep.subr.mxu0 0.0
    %2232 = vmatpush2.msra.mxu0 0.0
    %2233 = vmatprep.subr.mxu0 0.0
    %2234 = vmatpush2.msra.mxu0 0.0
    %2235 = vmatprep.subr.mxu0 0.0
    %2236 = vmatpush2.msra.mxu0 0.0
    %2237 = vmatprep.subr.mxu0 0.0
    %2238 = vmatpush2.msra.mxu0 0.0
    %2239 = vmatprep.subr.mxu0 0.0
    %2240 = vmatpush2.msra.mxu0 0.0
    %2241 = vmatprep.subr.mxu0 0.0
    %2242 = vmatpush2.msra.mxu0 0.0
    %2243 = vmatprep.subr.mxu0 0.0
    %2244 = vmatpush2.msra.mxu0 0.0
    %2245 = vmatprep.subr.mxu0 0.0
    %2246 = vmatpush2.msra.mxu0 0.0
    %2247 = vmatprep.subr.mxu0 0.0
    %2248 = vmatpush2.msra.mxu0 0.0
    %2249 = vmatprep.mubr.f32.mxu0 0.0
    %2250 = vmatmul.mubr.f32.gmra.mxu0 %v2162
    %v2251 = vpop.f32.mrf.mxu0
    %v2252 = vadd.f32 %v2159, %v2251
    %v2253 = vpop.f32.mrf.mxu0
    %2254 = vmatprep.mubr.f32.mxu0 0.0
    %2255 = vmatmul.mubr.f32.gmra.mxu0 %v2165
    %v2256 = vpop.f32.mrf.mxu0
    %v2257 = vadd.f32 %v2159, %v2256
    %v2258 = vpop.f32.mrf.mxu0
    %2259 = vmatprep.mubr.f32.mxu0 0.0
    %2260 = vmatmul.mubr.f32.gmra.mxu0 %v2168
    %v2261 = vpop.f32.mrf.mxu0
    %v2262 = vadd.f32 %v2159, %v2261
    %v2263 = vpop.f32.mrf.mxu0
    %2264 = vmatprep.mubr.f32.mxu0 0.0
    %2265 = vmatmul.mubr.f32.gmra.mxu0 %v2171
    %v2266 = vpop.f32.mrf.mxu0
    %v2267 = vadd.f32 %v2159, %v2266
    %v2268 = vpop.f32.mrf.mxu0
    %2269 = vmatprep.mubr.f32.mxu0 0.0
    %2270 = vmatmul.mubr.f32.gmra.mxu0 %v2174
    %v2271 = vpop.f32.mrf.mxu0
    %v2272 = vadd.f32 %v2159, %v2271
    %v2273 = vpop.f32.mrf.mxu0
    %2274 = vmatprep.mubr.f32.mxu0 0.0
    %2275 = vmatmul.mubr.f32.gmra.mxu0 %v2177
    %v2276 = vpop.f32.mrf.mxu0
    %v2277 = vadd.f32 %v2159, %v2276
    %v2278 = vpop.f32.mrf.mxu0
    %2279 = vmatprep.mubr.f32.mxu0 0.0
    %2280 = vmatmul.mubr.f32.gmra.mxu0 %v2180
    %v2281 = vpop.f32.mrf.mxu0
    %v2282 = vadd.f32 %v2159, %v2281
    %v2283 = vpop.f32.mrf.mxu0
    %2284 = vmatprep.mubr.f32.mxu0 0.0
    %2285 = vmatmul.mubr.f32.gmra.mxu0 %v2183
    %v2286 = vpop.f32.mrf.mxu0
    %v2287 = vadd.f32 %v2159, %v2286
    %v2288 = vpop.f32.mrf.mxu0
    %2289 = vdwg.mxu0
    %vm2290 = vcmask 31744
    %2291 = vst.msk [vmem:[%s14] sm:$0xff] %vm2290, %v2252
    %2292 = vst.msk [vmem:[%s14 + $0x8] sm:$0xff] %vm2290, %v2257
    %2293 = vst.msk [vmem:[%s14 + $0x10] sm:$0xff] %vm2290, %v2262
    %2294 = vst.msk [vmem:[%s14 + $0x18] sm:$0xff] %vm2290, %v2267
    %2295 = vst.msk [vmem:[%s14 + $0x20] sm:$0xff] %vm2290, %v2272
    %2296 = vst.msk [vmem:[%s14 + $0x28] sm:$0xff] %vm2290, %v2277
    %2297 = vst.msk [vmem:[%s14 + $0x30] sm:$0xff] %vm2290, %v2282
    %2298 = vst.msk [vmem:[%s14 + $0x38] sm:$0xff] %vm2290, %v2287
    // Predicated region
    $region82: #{tpu_custom_call.1} parent=1 // pred_check
      _
    $region83: #{tpu_custom_call.1} parent=1 // pred_check_branch
      %2300 = sbr.rel (0) target = $region85
    $region84: #{tpu_custom_call.1} parent=1 // pred_region
      %s2302 = ssub.s32 128, 128
      %2303 = vsyncadd [#allocation5], %s2302
      %s2305 = sshll.u32 [#allocation17], 4
      %s2306 = int_to_ptr.vmem [resolvable:$true] %s2305
      %2308 = dma.vmem_to_hbm [thread:$0]  %s2306, 128, %s12, [#allocation5]
    $region85: #{tpu_custom_call.1} parent=1 // pred_fallthru
      _
    // Predicated region
    $region86: #{tpu_custom_call.1} parent=1 // pred_check
      _
    $region87: #{tpu_custom_call.1} parent=1 // pred_check_branch
      %2310 = sbr.rel (0) target = $region89
    $region88: #{tpu_custom_call.1} parent=1 // pred_region
      %s2312 = ssub.s32 1024, 1024
      %2313 = vsyncadd [#allocation19], %s2312
      %s2314 = sshll.u32 [#allocation18], 4
      %s2315 = int_to_ptr.vmem [resolvable:$true] %s2314
      %2320 = dma.vmem_to_hbm [thread:$0]  %s2315, 1024, %s13, [#allocation19], 128, 128, 8
    $region89: #{tpu_custom_call.1} parent=1 // pred_fallthru
      _
    // Predicated region
    $region90: #{tpu_custom_call.1} parent=1 // pred_check
      _
    $region91: #{tpu_custom_call.1} parent=1 // pred_check_branch
      %2322 = sbr.rel (0) target = $region93
    $region92: #{tpu_custom_call.1} parent=1 // pred_region
      _
    $region93: #{tpu_custom_call.1} parent=1 // pred_fallthru
      _
    // Predicated region
    $region94: #{tpu_custom_call.1} parent=1 // pred_check
      _
    $region95: #{tpu_custom_call.1} parent=1 // pred_check_branch
      %2324 = sbr.rel (0) target = $region97
    $region96: #{tpu_custom_call.1} parent=1 // pred_region
      %2325 = dma.done [#allocation5], 128
    $region97: #{tpu_custom_call.1} parent=1 // pred_fallthru
      _
    // Predicated region
    $region98: #{tpu_custom_call.1} parent=1 // pred_check
      _
    $region99: #{tpu_custom_call.1} parent=1 // pred_check_branch
      %2327 = sbr.rel (0) target = $region101
    $region100: #{tpu_custom_call.1} parent=1 // pred_region
      %2328 = dma.done [#allocation19], 1024
    $region101: #{tpu_custom_call.1} parent=1 // pred_fallthru
      _
    // Predicated region
    $region102: #{tpu_custom_call.1} parent=1 // pred_check
      _
    $region103: #{tpu_custom_call.1} parent=1 // pred_check_branch
      %2330 = sbr.rel (0) target = $region105
    $region104: #{tpu_custom_call.1} parent=1 // pred_region
      _
    $region105: #{tpu_custom_call.1} parent=1 // pred_fallthru
      _
    %2331 = vsyncpa [#allocation4], 1
    %2332 = vsyncpa [#allocation7], 1
    %2333 = vsyncpa [#allocation10], 1
    %2334 = vsyncpa [#allocation13], 1
    %2335 = vsyncpa [#allocation16], 1
    %2336 = vsyncpa [#allocation5], 1
    %2337 = vsyncpa [#allocation19], 1

</llo_original>
